<compile_context>
chip_gen: v7x
topology: tpu7x:2x2x1
jax: 0.10.0
libtpu: 0.0.40
codegen_flags: <defaults>
</compile_context>

<pallas_src>
import functools

import jax
import jax.numpy as jnp
from jax import lax
from jax.experimental import pallas as pl
from jax.experimental.pallas import tpu as pltpu


def _lstm_ae_kernel(x_ref,                          # [T*B, I]
                    wih_e_ref, whh_e_ref, b_e_ref,  # [I,4H], [H,4H], [1,4H]
                    wbn_ref, bbn_ref,               # [H,BN], [1,BN]
                    wfus_ref, bfus_ref,             # [BN,4H], [1,4H]  (fused dec-input chain)
                    whh_d_ref,                      # [H,4H]
                    wout_ref, bout_ref,             # [H,O],  [1,O]
                    out_ref,                        # [T*B, O]
                    z_ref,                          # [B, BN]
                    *, T, B):
    H = whh_e_ref.shape[0]

    # ---- hoisted constants (outside the recurrences) ----
    whh_e = whh_e_ref[...]                     # [H, 4H] kept live across the loop
    whh_d = whh_d_ref[...]                     # [H, 4H]

    # Lane mask marking the tanh ("g") gate columns of the i|f|g|o layout.
    col = lax.broadcasted_iota(jnp.int32, (B, 4 * H), 1)
    g_mask = jnp.logical_and(col >= 2 * H, col < 3 * H)

    def activations(gates):
        # Single EUP pass: tanh(x) = 2*sigmoid(2x) - 1.  The selects/muls go
        # to the VPU; only one transcendental sweep over the [B,4H] tile.
        s = jax.nn.sigmoid(jnp.where(g_mask, 2.0 * gates, gates))
        return jnp.where(g_mask, 2.0 * s - 1.0, s)

    def gate_first(pre_gates):
        # t == 0: h0 == 0 and c0 == 0, so h @ W_hh == 0 and f*c == 0.
        acts = activations(pre_gates)
        i_g = acts[:, 0 * H:1 * H]
        g_g = acts[:, 2 * H:3 * H]
        o_g = acts[:, 3 * H:4 * H]
        c_new = i_g * g_g
        h_new = o_g * jnp.tanh(c_new)
        return h_new, c_new

    def gate_step(pre_gates, h, c, whh):
        # pre_gates already contains x_t @ W_ih + (b_ih + b_hh).
        gates = pre_gates + jnp.dot(h, whh, preferred_element_type=jnp.float32)
        acts = activations(gates)
        i_g = acts[:, 0 * H:1 * H]
        f_g = acts[:, 1 * H:2 * H]
        g_g = acts[:, 2 * H:3 * H]
        o_g = acts[:, 3 * H:4 * H]
        c_new = f_g * c + i_g * g_g
        h_new = o_g * jnp.tanh(c_new)
        return h_new, c_new

    # Encoder input->gate contributions for every timestep in one MXU op,
    # bias folded in once.  x arrives pre-flattened [T*B, I] from the wrapper.
    gx_e = (jnp.dot(x_ref[...], wih_e_ref[...],
                    preferred_element_type=jnp.float32)
            + b_e_ref[...])                    # [T*B, 4H]

    # ---- encoder LSTM (fully unrolled; only h @ W_hh per step, t=0 skipped) ----
    h, c = gate_first(gx_e[0:B, :])
    for t in range(1, T):
        h, c = gate_step(gx_e[t * B:(t + 1) * B, :], h, c, whh_e)
    h_n = h                                    # [B, H]

    # ---- bottleneck (z is an output) + fused decoder-input -> input-gate ----
    z = jnp.dot(h_n, wbn_ref[...], preferred_element_type=jnp.float32) + bbn_ref[...]
    z_ref[...] = z                             # [B, BN]
    # gx_d = (z @ wdi + bdi) @ wih_d + b_d, with (wdi@wih_d, bdi@wih_d+b_d)
    # pre-fused in the wrapper -> single matmul on the serial handoff.
    gx_d = (jnp.dot(z, wfus_ref[...], preferred_element_type=jnp.float32)
            + bfus_ref[...])                   # [B, 4H], time-invariant

    # ---- decoder LSTM (fully unrolled; only h @ W_hh per step, t=0 skipped) ----
    h, c = gate_first(gx_d)
    h_list = [h]
    for t in range(1, T):
        h, c = gate_step(gx_d, h, c, whh_d)
        h_list.append(h)

    # ---- output projection for the whole sequence in one MXU op, single
    #      lane-dense slab writeback (no per-step narrow stores, no reshape) ----
    hs = jnp.concatenate(h_list, axis=0)       # [T*B, H]
    out_ref[...] = (jnp.dot(hs, wout_ref[...], preferred_element_type=jnp.float32)
                    + bout_ref[...])           # [T*B, O]


def lstm_autoencoder(x, params):
    """x: [B, T, input_size] float32.  Returns (out [B,T,O], z [B,BN])."""
    B, T, I = x.shape
    BN = params["wbn"].shape[1]
    O = params["wout"].shape[1]

    # Pad batch to a multiple of 8 sublanes (padded rows are zero-initialized,
    # independent, and sliced off below).
    B_pad = ((B + 7) // 8) * 8
    if B_pad != B:
        x = jnp.pad(x, ((0, B_pad - B), (0, 0), (0, 0)))

    # Time-major, pre-flattened [T*B, I] (transpose + reshape folded into XLA).
    x_flat = jnp.transpose(x, (1, 0, 2)).reshape(T * B_pad, I)

    # Trace-time fusion of decoder_input -> decoder input-gate chain.
    w_fused = params["wdi"] @ params["wih_d"]                    # [BN, 4H]
    b_fused = params["bdi"] @ params["wih_d"] + params["b_d"]    # [1, 4H]

    vmem = pl.BlockSpec(memory_space=pltpu.MemorySpace.VMEM)
    out_flat, z = pl.pallas_call(
        functools.partial(_lstm_ae_kernel, T=T, B=B_pad),
        out_shape=(
            jax.ShapeDtypeStruct((T * B_pad, O), jnp.float32),
            jax.ShapeDtypeStruct((B_pad, BN), jnp.float32),
        ),
        in_specs=[vmem] * 11,
        out_specs=(vmem, vmem),
    )(x_flat,
      params["wih_e"], params["whh_e"], params["b_e"],
      params["wbn"], params["bbn"],
      w_fused, b_fused,
      params["whh_d"],
      params["wout"], params["bout"])

    out = jnp.transpose(out_flat.reshape(T, B_pad, O), (1, 0, 2))[:B]
    return out, z[:B]


def make_params(key, input_size, hidden_size, bottleneck_dim, output_size):
    """Deterministic synthetic parameters, PyTorch-shaped then pre-transposed
    for the kernel (W stored as [in, out]); LSTM biases are pre-summed."""
    H = hidden_size
    ks = jax.random.split(key, 14)
    u = lambda k, shape, bound: jax.random.uniform(k, shape, jnp.float32, -bound, bound)
    bnd = 1.0 / jnp.sqrt(H)

    # encoder LSTM (PyTorch: weight_ih [4H, I], weight_hh [4H, H])
    wih_e = u(ks[0], (4 * H, input_size), bnd)
    whh_e = u(ks[1], (4 * H, H), bnd)
    b_e = u(ks[2], (4 * H,), bnd) + u(ks[3], (4 * H,), bnd)   # b_ih + b_hh
    # bottleneck / decoder_input linears
    wbn = u(ks[4], (bottleneck_dim, H), bnd)
    bbn = u(ks[5], (bottleneck_dim,), bnd)
    wdi = u(ks[6], (H, bottleneck_dim), 1.0 / jnp.sqrt(bottleneck_dim))
    bdi = u(ks[7], (H,), 1.0 / jnp.sqrt(bottleneck_dim))
    # decoder LSTM (input_size = H)
    wih_d = u(ks[8], (4 * H, H), bnd)
    whh_d = u(ks[9], (4 * H, H), bnd)
    b_d = u(ks[10], (4 * H,), bnd) + u(ks[11], (4 * H,), bnd)
    # output linear
    wout = u(ks[12], (output_size, H), bnd)
    bout = u(ks[13], (output_size,), bnd)

    return {
        "wih_e": wih_e.T, "whh_e": whh_e.T, "b_e": b_e[None, :],
        "wbn": wbn.T, "bbn": bbn[None, :],
        "wdi": wdi.T, "bdi": bdi[None, :],
        "wih_d": wih_d.T, "whh_d": whh_d.T, "b_d": b_d[None, :],
        "wout": wout.T, "bout": bout[None, :],
    }


def _reference(x, p):
    """Pure-JAX reference with the original (unfused, true-tanh) semantics."""
    B, T, _ = x.shape
    H = p["whh_e"].shape[0]

    def cell(wih, whh, b):
        def step(carry, x_t):
            h, c = carry
            g = x_t @ wih + h @ whh + b
            i, f, gg, o = (jax.nn.sigmoid(g[:, :H]), jax.nn.sigmoid(g[:, H:2*H]),
                           jnp.tanh(g[:, 2*H:3*H]), jax.nn.sigmoid(g[:, 3*H:]))
            c = f * c + i * gg
            h = o * jnp.tanh(c)
            return (h, c), h
        return step

    init = (jnp.zeros((B, H)), jnp.zeros((B, H)))
    (h_n, _), _ = lax.scan(cell(p["wih_e"], p["whh_e"], p["b_e"]), init,
                           jnp.transpose(x, (1, 0, 2)))
    z = h_n @ p["wbn"] + p["bbn"]
    dec_in = z @ p["wdi"] + p["bdi"]
    _, hs = lax.scan(cell(p["wih_d"], p["whh_d"], p["b_d"]), init,
                     jnp.broadcast_to(dec_in, (T,) + dec_in.shape))
    out = hs @ p["wout"] + p["bout"]
    return jnp.transpose(out, (1, 0, 2)), z


if __name__ == "__main__":
    B, T = 2, 8
    input_size, hidden_size, bottleneck_dim, output_size = 4, 32, 16, 4

    key = jax.random.PRNGKey(0)
    kx, kp = jax.random.split(key)
    x = jax.random.normal(kx, (B, T, input_size), jnp.float32)
    params = make_params(kp, input_size, hidden_size, bottleneck_dim, output_size)

    out, z = jax.block_until_ready(lstm_autoencoder(x, params))
    out_ref, z_ref = _reference(x, params)

    assert out.shape == (B, T, output_size) and z.shape == (B, bottleneck_dim)
    assert jnp.allclose(out, out_ref, atol=1e-4, rtol=1e-4)
    assert jnp.allclose(z, z_ref, atol=1e-4, rtol=1e-4)
    print("KERNEL_OK")
</pallas_src>

<mosaic_0001>
module attributes {stable_mosaic.version = 11 : i64} {
  func.func @_lstm_ae_kernel(%arg0: memref<64x4xf32, #tpu.memory_space<vmem>>, %arg1: memref<4x128xf32, #tpu.memory_space<vmem>>, %arg2: memref<32x128xf32, #tpu.memory_space<vmem>>, %arg3: memref<1x128xf32, #tpu.memory_space<vmem>>, %arg4: memref<32x16xf32, #tpu.memory_space<vmem>>, %arg5: memref<1x16xf32, #tpu.memory_space<vmem>>, %arg6: memref<16x128xf32, #tpu.memory_space<vmem>>, %arg7: memref<1x128xf32, #tpu.memory_space<vmem>>, %arg8: memref<32x128xf32, #tpu.memory_space<vmem>>, %arg9: memref<32x4xf32, #tpu.memory_space<vmem>>, %arg10: memref<1x4xf32, #tpu.memory_space<vmem>>, %arg11: memref<64x4xf32, #tpu.memory_space<vmem>>, %arg12: memref<8x16xf32, #tpu.memory_space<vmem>>) attributes {dimension_semantics = [], scalar_prefetch = 0 : i64, scratch_operands = 0 : i64, tpu.core_type = #tpu.core_type<tc>} {
    %c0 = arith.constant 0 : index
    %c0_0 = arith.constant 0 : index
    %0 = vector.load %arg2[%c0, %c0_0] : memref<32x128xf32, #tpu.memory_space<vmem>>, vector<32x128xf32>
    %c0_1 = arith.constant 0 : index
    %c0_2 = arith.constant 0 : index
    %1 = vector.load %arg8[%c0_1, %c0_2] : memref<32x128xf32, #tpu.memory_space<vmem>>, vector<32x128xf32>
    %2 = tpu.iota {dimensions = array<i32: 1>} : vector<8x128xi32>
    %c64_i32 = arith.constant 64 : i32
    %3 = vector.broadcast %c64_i32 : i32 to vector<8x128xi32>
    %4 = arith.cmpi sge, %2, %3 : vector<8x128xi32>
    %c96_i32 = arith.constant 96 : i32
    %5 = vector.broadcast %c96_i32 : i32 to vector<8x128xi32>
    %6 = arith.cmpi slt, %2, %5 : vector<8x128xi32>
    %7 = arith.andi %4, %6 : vector<8x128xi1>
    %c0_3 = arith.constant 0 : index
    %c0_4 = arith.constant 0 : index
    %8 = vector.load %arg0[%c0_3, %c0_4] : memref<64x4xf32, #tpu.memory_space<vmem>>, vector<64x4xf32>
    %c0_5 = arith.constant 0 : index
    %c0_6 = arith.constant 0 : index
    %9 = vector.load %arg1[%c0_5, %c0_6] : memref<4x128xf32, #tpu.memory_space<vmem>>, vector<4x128xf32>
    %cst = arith.constant dense<0.000000e+00> : vector<64x128xf32>
    %10 = tpu.matmul %8, %9, %cst {dimension_numbers = #tpu.dot_dimension_numbers<[1], [0], [0], [1], [0, 0, 1, 1], [], []>} : vector<64x4xf32>, vector<4x128xf32>, vector<64x128xf32> -> vector<64x128xf32>
    %c0_7 = arith.constant 0 : index
    %c0_8 = arith.constant 0 : index
    %11 = vector.load %arg3[%c0_7, %c0_8] : memref<1x128xf32, #tpu.memory_space<vmem>>, vector<1x128xf32>
    %12 = vector.broadcast %11 : vector<1x128xf32> to vector<64x128xf32>
    %13 = arith.addf %10, %12 : vector<64x128xf32>
    %14 = vector.extract_strided_slice %13 {offsets = [0, 0], sizes = [8, 128], strides = [1, 1]} : vector<64x128xf32> to vector<8x128xf32>
    %cst_9 = arith.constant 2.000000e+00 : f32
    %15 = vector.broadcast %cst_9 : f32 to vector<8x128xf32>
    %16 = arith.mulf %15, %14 : vector<8x128xf32>
    %17 = arith.select %7, %16, %14 : vector<8x128xi1>, vector<8x128xf32>
    %18 = arith.negf %17 : vector<8x128xf32>
    %19 = math.exp %18 : vector<8x128xf32>
    %cst_10 = arith.constant 1.000000e+00 : f32
    %20 = vector.broadcast %cst_10 : f32 to vector<8x128xf32>
    %21 = arith.addf %20, %19 : vector<8x128xf32>
    %22 = arith.divf %20, %21 : vector<8x128xf32>
    %cst_11 = arith.constant 2.000000e+00 : f32
    %23 = vector.broadcast %cst_11 : f32 to vector<8x128xf32>
    %24 = arith.mulf %23, %22 : vector<8x128xf32>
    %cst_12 = arith.constant 1.000000e+00 : f32
    %25 = vector.broadcast %cst_12 : f32 to vector<8x128xf32>
    %26 = arith.subf %24, %25 : vector<8x128xf32>
    %27 = arith.select %7, %26, %22 : vector<8x128xi1>, vector<8x128xf32>
    %28 = vector.extract_strided_slice %27 {offsets = [0, 0], sizes = [8, 32], strides = [1, 1]} : vector<8x128xf32> to vector<8x32xf32>
    %29 = vector.extract_strided_slice %27 {offsets = [0, 64], sizes = [8, 32], strides = [1, 1]} : vector<8x128xf32> to vector<8x32xf32>
    %30 = vector.extract_strided_slice %27 {offsets = [0, 96], sizes = [8, 32], strides = [1, 1]} : vector<8x128xf32> to vector<8x32xf32>
    %31 = arith.mulf %28, %29 : vector<8x32xf32>
    %32 = math.tanh %31 : vector<8x32xf32>
    %33 = arith.mulf %30, %32 : vector<8x32xf32>
    %34 = vector.extract_strided_slice %13 {offsets = [8, 0], sizes = [8, 128], strides = [1, 1]} : vector<64x128xf32> to vector<8x128xf32>
    %cst_13 = arith.constant dense<0.000000e+00> : vector<8x128xf32>
    %35 = tpu.matmul %33, %0, %cst_13 {dimension_numbers = #tpu.dot_dimension_numbers<[1], [0], [0], [1], [0, 0, 1, 1], [], []>} : vector<8x32xf32>, vector<32x128xf32>, vector<8x128xf32> -> vector<8x128xf32>
    %36 = arith.addf %34, %35 : vector<8x128xf32>
    %cst_14 = arith.constant 2.000000e+00 : f32
    %37 = vector.broadcast %cst_14 : f32 to vector<8x128xf32>
    %38 = arith.mulf %37, %36 : vector<8x128xf32>
    %39 = arith.select %7, %38, %36 : vector<8x128xi1>, vector<8x128xf32>
    %40 = arith.negf %39 : vector<8x128xf32>
    %41 = math.exp %40 : vector<8x128xf32>
    %cst_15 = arith.constant 1.000000e+00 : f32
    %42 = vector.broadcast %cst_15 : f32 to vector<8x128xf32>
    %43 = arith.addf %42, %41 : vector<8x128xf32>
    %44 = arith.divf %42, %43 : vector<8x128xf32>
    %cst_16 = arith.constant 2.000000e+00 : f32
    %45 = vector.broadcast %cst_16 : f32 to vector<8x128xf32>
    %46 = arith.mulf %45, %44 : vector<8x128xf32>
    %cst_17 = arith.constant 1.000000e+00 : f32
    %47 = vector.broadcast %cst_17 : f32 to vector<8x128xf32>
    %48 = arith.subf %46, %47 : vector<8x128xf32>
    %49 = arith.select %7, %48, %44 : vector<8x128xi1>, vector<8x128xf32>
    %50 = vector.extract_strided_slice %49 {offsets = [0, 0], sizes = [8, 32], strides = [1, 1]} : vector<8x128xf32> to vector<8x32xf32>
    %51 = vector.extract_strided_slice %49 {offsets = [0, 32], sizes = [8, 32], strides = [1, 1]} : vector<8x128xf32> to vector<8x32xf32>
    %52 = vector.extract_strided_slice %49 {offsets = [0, 64], sizes = [8, 32], strides = [1, 1]} : vector<8x128xf32> to vector<8x32xf32>
    %53 = vector.extract_strided_slice %49 {offsets = [0, 96], sizes = [8, 32], strides = [1, 1]} : vector<8x128xf32> to vector<8x32xf32>
    %54 = arith.mulf %51, %31 : vector<8x32xf32>
    %55 = arith.mulf %50, %52 : vector<8x32xf32>
    %56 = arith.addf %54, %55 : vector<8x32xf32>
    %57 = math.tanh %56 : vector<8x32xf32>
    %58 = arith.mulf %53, %57 : vector<8x32xf32>
    %59 = vector.extract_strided_slice %13 {offsets = [16, 0], sizes = [8, 128], strides = [1, 1]} : vector<64x128xf32> to vector<8x128xf32>
    %cst_18 = arith.constant dense<0.000000e+00> : vector<8x128xf32>
    %60 = tpu.matmul %58, %0, %cst_18 {dimension_numbers = #tpu.dot_dimension_numbers<[1], [0], [0], [1], [0, 0, 1, 1], [], []>} : vector<8x32xf32>, vector<32x128xf32>, vector<8x128xf32> -> vector<8x128xf32>
    %61 = arith.addf %59, %60 : vector<8x128xf32>
    %cst_19 = arith.constant 2.000000e+00 : f32
    %62 = vector.broadcast %cst_19 : f32 to vector<8x128xf32>
    %63 = arith.mulf %62, %61 : vector<8x128xf32>
    %64 = arith.select %7, %63, %61 : vector<8x128xi1>, vector<8x128xf32>
    %65 = arith.negf %64 : vector<8x128xf32>
    %66 = math.exp %65 : vector<8x128xf32>
    %cst_20 = arith.constant 1.000000e+00 : f32
    %67 = vector.broadcast %cst_20 : f32 to vector<8x128xf32>
    %68 = arith.addf %67, %66 : vector<8x128xf32>
    %69 = arith.divf %67, %68 : vector<8x128xf32>
    %cst_21 = arith.constant 2.000000e+00 : f32
    %70 = vector.broadcast %cst_21 : f32 to vector<8x128xf32>
    %71 = arith.mulf %70, %69 : vector<8x128xf32>
    %cst_22 = arith.constant 1.000000e+00 : f32
    %72 = vector.broadcast %cst_22 : f32 to vector<8x128xf32>
    %73 = arith.subf %71, %72 : vector<8x128xf32>
    %74 = arith.select %7, %73, %69 : vector<8x128xi1>, vector<8x128xf32>
    %75 = vector.extract_strided_slice %74 {offsets = [0, 0], sizes = [8, 32], strides = [1, 1]} : vector<8x128xf32> to vector<8x32xf32>
    %76 = vector.extract_strided_slice %74 {offsets = [0, 32], sizes = [8, 32], strides = [1, 1]} : vector<8x128xf32> to vector<8x32xf32>
    %77 = vector.extract_strided_slice %74 {offsets = [0, 64], sizes = [8, 32], strides = [1, 1]} : vector<8x128xf32> to vector<8x32xf32>
    %78 = vector.extract_strided_slice %74 {offsets = [0, 96], sizes = [8, 32], strides = [1, 1]} : vector<8x128xf32> to vector<8x32xf32>
    %79 = arith.mulf %76, %56 : vector<8x32xf32>
    %80 = arith.mulf %75, %77 : vector<8x32xf32>
    %81 = arith.addf %79, %80 : vector<8x32xf32>
    %82 = math.tanh %81 : vector<8x32xf32>
    %83 = arith.mulf %78, %82 : vector<8x32xf32>
    %84 = vector.extract_strided_slice %13 {offsets = [24, 0], sizes = [8, 128], strides = [1, 1]} : vector<64x128xf32> to vector<8x128xf32>
    %cst_23 = arith.constant dense<0.000000e+00> : vector<8x128xf32>
    %85 = tpu.matmul %83, %0, %cst_23 {dimension_numbers = #tpu.dot_dimension_numbers<[1], [0], [0], [1], [0, 0, 1, 1], [], []>} : vector<8x32xf32>, vector<32x128xf32>, vector<8x128xf32> -> vector<8x128xf32>
    %86 = arith.addf %84, %85 : vector<8x128xf32>
    %cst_24 = arith.constant 2.000000e+00 : f32
    %87 = vector.broadcast %cst_24 : f32 to vector<8x128xf32>
    %88 = arith.mulf %87, %86 : vector<8x128xf32>
    %89 = arith.select %7, %88, %86 : vector<8x128xi1>, vector<8x128xf32>
    %90 = arith.negf %89 : vector<8x128xf32>
    %91 = math.exp %90 : vector<8x128xf32>
    %cst_25 = arith.constant 1.000000e+00 : f32
    %92 = vector.broadcast %cst_25 : f32 to vector<8x128xf32>
    %93 = arith.addf %92, %91 : vector<8x128xf32>
    %94 = arith.divf %92, %93 : vector<8x128xf32>
    %cst_26 = arith.constant 2.000000e+00 : f32
    %95 = vector.broadcast %cst_26 : f32 to vector<8x128xf32>
    %96 = arith.mulf %95, %94 : vector<8x128xf32>
    %cst_27 = arith.constant 1.000000e+00 : f32
    %97 = vector.broadcast %cst_27 : f32 to vector<8x128xf32>
    %98 = arith.subf %96, %97 : vector<8x128xf32>
    %99 = arith.select %7, %98, %94 : vector<8x128xi1>, vector<8x128xf32>
    %100 = vector.extract_strided_slice %99 {offsets = [0, 0], sizes = [8, 32], strides = [1, 1]} : vector<8x128xf32> to vector<8x32xf32>
    %101 = vector.extract_strided_slice %99 {offsets = [0, 32], sizes = [8, 32], strides = [1, 1]} : vector<8x128xf32> to vector<8x32xf32>
    %102 = vector.extract_strided_slice %99 {offsets = [0, 64], sizes = [8, 32], strides = [1, 1]} : vector<8x128xf32> to vector<8x32xf32>
    %103 = vector.extract_strided_slice %99 {offsets = [0, 96], sizes = [8, 32], strides = [1, 1]} : vector<8x128xf32> to vector<8x32xf32>
    %104 = arith.mulf %101, %81 : vector<8x32xf32>
    %105 = arith.mulf %100, %102 : vector<8x32xf32>
    %106 = arith.addf %104, %105 : vector<8x32xf32>
    %107 = math.tanh %106 : vector<8x32xf32>
    %108 = arith.mulf %103, %107 : vector<8x32xf32>
    %109 = vector.extract_strided_slice %13 {offsets = [32, 0], sizes = [8, 128], strides = [1, 1]} : vector<64x128xf32> to vector<8x128xf32>
    %cst_28 = arith.constant dense<0.000000e+00> : vector<8x128xf32>
    %110 = tpu.matmul %108, %0, %cst_28 {dimension_numbers = #tpu.dot_dimension_numbers<[1], [0], [0], [1], [0, 0, 1, 1], [], []>} : vector<8x32xf32>, vector<32x128xf32>, vector<8x128xf32> -> vector<8x128xf32>
    %111 = arith.addf %109, %110 : vector<8x128xf32>
    %cst_29 = arith.constant 2.000000e+00 : f32
    %112 = vector.broadcast %cst_29 : f32 to vector<8x128xf32>
    %113 = arith.mulf %112, %111 : vector<8x128xf32>
    %114 = arith.select %7, %113, %111 : vector<8x128xi1>, vector<8x128xf32>
    %115 = arith.negf %114 : vector<8x128xf32>
    %116 = math.exp %115 : vector<8x128xf32>
    %cst_30 = arith.constant 1.000000e+00 : f32
    %117 = vector.broadcast %cst_30 : f32 to vector<8x128xf32>
    %118 = arith.addf %117, %116 : vector<8x128xf32>
    %119 = arith.divf %117, %118 : vector<8x128xf32>
    %cst_31 = arith.constant 2.000000e+00 : f32
    %120 = vector.broadcast %cst_31 : f32 to vector<8x128xf32>
    %121 = arith.mulf %120, %119 : vector<8x128xf32>
    %cst_32 = arith.constant 1.000000e+00 : f32
    %122 = vector.broadcast %cst_32 : f32 to vector<8x128xf32>
    %123 = arith.subf %121, %122 : vector<8x128xf32>
    %124 = arith.select %7, %123, %119 : vector<8x128xi1>, vector<8x128xf32>
    %125 = vector.extract_strided_slice %124 {offsets = [0, 0], sizes = [8, 32], strides = [1, 1]} : vector<8x128xf32> to vector<8x32xf32>
    %126 = vector.extract_strided_slice %124 {offsets = [0, 32], sizes = [8, 32], strides = [1, 1]} : vector<8x128xf32> to vector<8x32xf32>
    %127 = vector.extract_strided_slice %124 {offsets = [0, 64], sizes = [8, 32], strides = [1, 1]} : vector<8x128xf32> to vector<8x32xf32>
    %128 = vector.extract_strided_slice %124 {offsets = [0, 96], sizes = [8, 32], strides = [1, 1]} : vector<8x128xf32> to vector<8x32xf32>
    %129 = arith.mulf %126, %106 : vector<8x32xf32>
    %130 = arith.mulf %125, %127 : vector<8x32xf32>
    %131 = arith.addf %129, %130 : vector<8x32xf32>
    %132 = math.tanh %131 : vector<8x32xf32>
    %133 = arith.mulf %128, %132 : vector<8x32xf32>
    %134 = vector.extract_strided_slice %13 {offsets = [40, 0], sizes = [8, 128], strides = [1, 1]} : vector<64x128xf32> to vector<8x128xf32>
    %cst_33 = arith.constant dense<0.000000e+00> : vector<8x128xf32>
    %135 = tpu.matmul %133, %0, %cst_33 {dimension_numbers = #tpu.dot_dimension_numbers<[1], [0], [0], [1], [0, 0, 1, 1], [], []>} : vector<8x32xf32>, vector<32x128xf32>, vector<8x128xf32> -> vector<8x128xf32>
    %136 = arith.addf %134, %135 : vector<8x128xf32>
    %cst_34 = arith.constant 2.000000e+00 : f32
    %137 = vector.broadcast %cst_34 : f32 to vector<8x128xf32>
    %138 = arith.mulf %137, %136 : vector<8x128xf32>
    %139 = arith.select %7, %138, %136 : vector<8x128xi1>, vector<8x128xf32>
    %140 = arith.negf %139 : vector<8x128xf32>
    %141 = math.exp %140 : vector<8x128xf32>
    %cst_35 = arith.constant 1.000000e+00 : f32
    %142 = vector.broadcast %cst_35 : f32 to vector<8x128xf32>
    %143 = arith.addf %142, %141 : vector<8x128xf32>
    %144 = arith.divf %142, %143 : vector<8x128xf32>
    %cst_36 = arith.constant 2.000000e+00 : f32
    %145 = vector.broadcast %cst_36 : f32 to vector<8x128xf32>
    %146 = arith.mulf %145, %144 : vector<8x128xf32>
    %cst_37 = arith.constant 1.000000e+00 : f32
    %147 = vector.broadcast %cst_37 : f32 to vector<8x128xf32>
    %148 = arith.subf %146, %147 : vector<8x128xf32>
    %149 = arith.select %7, %148, %144 : vector<8x128xi1>, vector<8x128xf32>
    %150 = vector.extract_strided_slice %149 {offsets = [0, 0], sizes = [8, 32], strides = [1, 1]} : vector<8x128xf32> to vector<8x32xf32>
    %151 = vector.extract_strided_slice %149 {offsets = [0, 32], sizes = [8, 32], strides = [1, 1]} : vector<8x128xf32> to vector<8x32xf32>
    %152 = vector.extract_strided_slice %149 {offsets = [0, 64], sizes = [8, 32], strides = [1, 1]} : vector<8x128xf32> to vector<8x32xf32>
    %153 = vector.extract_strided_slice %149 {offsets = [0, 96], sizes = [8, 32], strides = [1, 1]} : vector<8x128xf32> to vector<8x32xf32>
    %154 = arith.mulf %151, %131 : vector<8x32xf32>
    %155 = arith.mulf %150, %152 : vector<8x32xf32>
    %156 = arith.addf %154, %155 : vector<8x32xf32>
    %157 = math.tanh %156 : vector<8x32xf32>
    %158 = arith.mulf %153, %157 : vector<8x32xf32>
    %159 = vector.extract_strided_slice %13 {offsets = [48, 0], sizes = [8, 128], strides = [1, 1]} : vector<64x128xf32> to vector<8x128xf32>
    %cst_38 = arith.constant dense<0.000000e+00> : vector<8x128xf32>
    %160 = tpu.matmul %158, %0, %cst_38 {dimension_numbers = #tpu.dot_dimension_numbers<[1], [0], [0], [1], [0, 0, 1, 1], [], []>} : vector<8x32xf32>, vector<32x128xf32>, vector<8x128xf32> -> vector<8x128xf32>
    %161 = arith.addf %159, %160 : vector<8x128xf32>
    %cst_39 = arith.constant 2.000000e+00 : f32
    %162 = vector.broadcast %cst_39 : f32 to vector<8x128xf32>
    %163 = arith.mulf %162, %161 : vector<8x128xf32>
    %164 = arith.select %7, %163, %161 : vector<8x128xi1>, vector<8x128xf32>
    %165 = arith.negf %164 : vector<8x128xf32>
    %166 = math.exp %165 : vector<8x128xf32>
    %cst_40 = arith.constant 1.000000e+00 : f32
    %167 = vector.broadcast %cst_40 : f32 to vector<8x128xf32>
    %168 = arith.addf %167, %166 : vector<8x128xf32>
    %169 = arith.divf %167, %168 : vector<8x128xf32>
    %cst_41 = arith.constant 2.000000e+00 : f32
    %170 = vector.broadcast %cst_41 : f32 to vector<8x128xf32>
    %171 = arith.mulf %170, %169 : vector<8x128xf32>
    %cst_42 = arith.constant 1.000000e+00 : f32
    %172 = vector.broadcast %cst_42 : f32 to vector<8x128xf32>
    %173 = arith.subf %171, %172 : vector<8x128xf32>
    %174 = arith.select %7, %173, %169 : vector<8x128xi1>, vector<8x128xf32>
    %175 = vector.extract_strided_slice %174 {offsets = [0, 0], sizes = [8, 32], strides = [1, 1]} : vector<8x128xf32> to vector<8x32xf32>
    %176 = vector.extract_strided_slice %174 {offsets = [0, 32], sizes = [8, 32], strides = [1, 1]} : vector<8x128xf32> to vector<8x32xf32>
    %177 = vector.extract_strided_slice %174 {offsets = [0, 64], sizes = [8, 32], strides = [1, 1]} : vector<8x128xf32> to vector<8x32xf32>
    %178 = vector.extract_strided_slice %174 {offsets = [0, 96], sizes = [8, 32], strides = [1, 1]} : vector<8x128xf32> to vector<8x32xf32>
    %179 = arith.mulf %176, %156 : vector<8x32xf32>
    %180 = arith.mulf %175, %177 : vector<8x32xf32>
    %181 = arith.addf %179, %180 : vector<8x32xf32>
    %182 = math.tanh %181 : vector<8x32xf32>
    %183 = arith.mulf %178, %182 : vector<8x32xf32>
    %184 = vector.extract_strided_slice %13 {offsets = [56, 0], sizes = [8, 128], strides = [1, 1]} : vector<64x128xf32> to vector<8x128xf32>
    %cst_43 = arith.constant dense<0.000000e+00> : vector<8x128xf32>
    %185 = tpu.matmul %183, %0, %cst_43 {dimension_numbers = #tpu.dot_dimension_numbers<[1], [0], [0], [1], [0, 0, 1, 1], [], []>} : vector<8x32xf32>, vector<32x128xf32>, vector<8x128xf32> -> vector<8x128xf32>
    %186 = arith.addf %184, %185 : vector<8x128xf32>
    %cst_44 = arith.constant 2.000000e+00 : f32
    %187 = vector.broadcast %cst_44 : f32 to vector<8x128xf32>
    %188 = arith.mulf %187, %186 : vector<8x128xf32>
    %189 = arith.select %7, %188, %186 : vector<8x128xi1>, vector<8x128xf32>
    %190 = arith.negf %189 : vector<8x128xf32>
    %191 = math.exp %190 : vector<8x128xf32>
    %cst_45 = arith.constant 1.000000e+00 : f32
    %192 = vector.broadcast %cst_45 : f32 to vector<8x128xf32>
    %193 = arith.addf %192, %191 : vector<8x128xf32>
    %194 = arith.divf %192, %193 : vector<8x128xf32>
    %cst_46 = arith.constant 2.000000e+00 : f32
    %195 = vector.broadcast %cst_46 : f32 to vector<8x128xf32>
    %196 = arith.mulf %195, %194 : vector<8x128xf32>
    %cst_47 = arith.constant 1.000000e+00 : f32
    %197 = vector.broadcast %cst_47 : f32 to vector<8x128xf32>
    %198 = arith.subf %196, %197 : vector<8x128xf32>
    %199 = arith.select %7, %198, %194 : vector<8x128xi1>, vector<8x128xf32>
    %200 = vector.extract_strided_slice %199 {offsets = [0, 0], sizes = [8, 32], strides = [1, 1]} : vector<8x128xf32> to vector<8x32xf32>
    %201 = vector.extract_strided_slice %199 {offsets = [0, 32], sizes = [8, 32], strides = [1, 1]} : vector<8x128xf32> to vector<8x32xf32>
    %202 = vector.extract_strided_slice %199 {offsets = [0, 64], sizes = [8, 32], strides = [1, 1]} : vector<8x128xf32> to vector<8x32xf32>
    %203 = vector.extract_strided_slice %199 {offsets = [0, 96], sizes = [8, 32], strides = [1, 1]} : vector<8x128xf32> to vector<8x32xf32>
    %204 = arith.mulf %201, %181 : vector<8x32xf32>
    %205 = arith.mulf %200, %202 : vector<8x32xf32>
    %206 = arith.addf %204, %205 : vector<8x32xf32>
    %207 = math.tanh %206 : vector<8x32xf32>
    %208 = arith.mulf %203, %207 : vector<8x32xf32>
    %c0_48 = arith.constant 0 : index
    %c0_49 = arith.constant 0 : index
    %209 = vector.load %arg4[%c0_48, %c0_49] : memref<32x16xf32, #tpu.memory_space<vmem>>, vector<32x16xf32>
    %cst_50 = arith.constant dense<0.000000e+00> : vector<8x16xf32>
    %210 = tpu.matmul %208, %209, %cst_50 {dimension_numbers = #tpu.dot_dimension_numbers<[1], [0], [0], [1], [0, 0, 1, 1], [], []>} : vector<8x32xf32>, vector<32x16xf32>, vector<8x16xf32> -> vector<8x16xf32>
    %c0_51 = arith.constant 0 : index
    %c0_52 = arith.constant 0 : index
    %211 = vector.load %arg5[%c0_51, %c0_52] : memref<1x16xf32, #tpu.memory_space<vmem>>, vector<1x16xf32>
    %212 = vector.broadcast %211 : vector<1x16xf32> to vector<8x16xf32>
    %213 = arith.addf %210, %212 : vector<8x16xf32>
    %c0_53 = arith.constant 0 : index
    %c0_54 = arith.constant 0 : index
    %214 = vector.load %arg12[%c0_53, %c0_54] : memref<8x16xf32, #tpu.memory_space<vmem>>, vector<8x16xf32>
    tpu.vector_store %arg12[%c0_53, %c0_54], %213 {strides = array<i32>} : memref<8x16xf32, #tpu.memory_space<vmem>>, vector<8x16xf32>,
    %c0_55 = arith.constant 0 : index
    %c0_56 = arith.constant 0 : index
    %215 = vector.load %arg6[%c0_55, %c0_56] : memref<16x128xf32, #tpu.memory_space<vmem>>, vector<16x128xf32>
    %cst_57 = arith.constant dense<0.000000e+00> : vector<8x128xf32>
    %216 = tpu.matmul %213, %215, %cst_57 {dimension_numbers = #tpu.dot_dimension_numbers<[1], [0], [0], [1], [0, 0, 1, 1], [], []>} : vector<8x16xf32>, vector<16x128xf32>, vector<8x128xf32> -> vector<8x128xf32>
    %c0_58 = arith.constant 0 : index
    %c0_59 = arith.constant 0 : index
    %217 = vector.load %arg7[%c0_58, %c0_59] : memref<1x128xf32, #tpu.memory_space<vmem>>, vector<1x128xf32>
    %218 = vector.broadcast %217 : vector<1x128xf32> to vector<8x128xf32>
    %219 = arith.addf %216, %218 : vector<8x128xf32>
    %cst_60 = arith.constant 2.000000e+00 : f32
    %220 = vector.broadcast %cst_60 : f32 to vector<8x128xf32>
    %221 = arith.mulf %220, %219 : vector<8x128xf32>
    %222 = arith.select %7, %221, %219 : vector<8x128xi1>, vector<8x128xf32>
    %223 = arith.negf %222 : vector<8x128xf32>
    %224 = math.exp %223 : vector<8x128xf32>
    %cst_61 = arith.constant 1.000000e+00 : f32
    %225 = vector.broadcast %cst_61 : f32 to vector<8x128xf32>
    %226 = arith.addf %225, %224 : vector<8x128xf32>
    %227 = arith.divf %225, %226 : vector<8x128xf32>
    %cst_62 = arith.constant 2.000000e+00 : f32
    %228 = vector.broadcast %cst_62 : f32 to vector<8x128xf32>
    %229 = arith.mulf %228, %227 : vector<8x128xf32>
    %cst_63 = arith.constant 1.000000e+00 : f32
    %230 = vector.broadcast %cst_63 : f32 to vector<8x128xf32>
    %231 = arith.subf %229, %230 : vector<8x128xf32>
    %232 = arith.select %7, %231, %227 : vector<8x128xi1>, vector<8x128xf32>
    %233 = vector.extract_strided_slice %232 {offsets = [0, 0], sizes = [8, 32], strides = [1, 1]} : vector<8x128xf32> to vector<8x32xf32>
    %234 = vector.extract_strided_slice %232 {offsets = [0, 64], sizes = [8, 32], strides = [1, 1]} : vector<8x128xf32> to vector<8x32xf32>
    %235 = vector.extract_strided_slice %232 {offsets = [0, 96], sizes = [8, 32], strides = [1, 1]} : vector<8x128xf32> to vector<8x32xf32>
    %236 = arith.mulf %233, %234 : vector<8x32xf32>
    %237 = math.tanh %236 : vector<8x32xf32>
    %238 = arith.mulf %235, %237 : vector<8x32xf32>
    %cst_64 = arith.constant dense<0.000000e+00> : vector<8x128xf32>
    %239 = tpu.matmul %238, %1, %cst_64 {dimension_numbers = #tpu.dot_dimension_numbers<[1], [0], [0], [1], [0, 0, 1, 1], [], []>} : vector<8x32xf32>, vector<32x128xf32>, vector<8x128xf32> -> vector<8x128xf32>
    %240 = arith.addf %219, %239 : vector<8x128xf32>
    %cst_65 = arith.constant 2.000000e+00 : f32
    %241 = vector.broadcast %cst_65 : f32 to vector<8x128xf32>
    %242 = arith.mulf %241, %240 : vector<8x128xf32>
    %243 = arith.select %7, %242, %240 : vector<8x128xi1>, vector<8x128xf32>
    %244 = arith.negf %243 : vector<8x128xf32>
    %245 = math.exp %244 : vector<8x128xf32>
    %cst_66 = arith.constant 1.000000e+00 : f32
    %246 = vector.broadcast %cst_66 : f32 to vector<8x128xf32>
    %247 = arith.addf %246, %245 : vector<8x128xf32>
    %248 = arith.divf %246, %247 : vector<8x128xf32>
    %cst_67 = arith.constant 2.000000e+00 : f32
    %249 = vector.broadcast %cst_67 : f32 to vector<8x128xf32>
    %250 = arith.mulf %249, %248 : vector<8x128xf32>
    %cst_68 = arith.constant 1.000000e+00 : f32
    %251 = vector.broadcast %cst_68 : f32 to vector<8x128xf32>
    %252 = arith.subf %250, %251 : vector<8x128xf32>
    %253 = arith.select %7, %252, %248 : vector<8x128xi1>, vector<8x128xf32>
    %254 = vector.extract_strided_slice %253 {offsets = [0, 0], sizes = [8, 32], strides = [1, 1]} : vector<8x128xf32> to vector<8x32xf32>
    %255 = vector.extract_strided_slice %253 {offsets = [0, 32], sizes = [8, 32], strides = [1, 1]} : vector<8x128xf32> to vector<8x32xf32>
    %256 = vector.extract_strided_slice %253 {offsets = [0, 64], sizes = [8, 32], strides = [1, 1]} : vector<8x128xf32> to vector<8x32xf32>
    %257 = vector.extract_strided_slice %253 {offsets = [0, 96], sizes = [8, 32], strides = [1, 1]} : vector<8x128xf32> to vector<8x32xf32>
    %258 = arith.mulf %255, %236 : vector<8x32xf32>
    %259 = arith.mulf %254, %256 : vector<8x32xf32>
    %260 = arith.addf %258, %259 : vector<8x32xf32>
    %261 = math.tanh %260 : vector<8x32xf32>
    %262 = arith.mulf %257, %261 : vector<8x32xf32>
    %cst_69 = arith.constant dense<0.000000e+00> : vector<8x128xf32>
    %263 = tpu.matmul %262, %1, %cst_69 {dimension_numbers = #tpu.dot_dimension_numbers<[1], [0], [0], [1], [0, 0, 1, 1], [], []>} : vector<8x32xf32>, vector<32x128xf32>, vector<8x128xf32> -> vector<8x128xf32>
    %264 = arith.addf %219, %263 : vector<8x128xf32>
    %cst_70 = arith.constant 2.000000e+00 : f32
    %265 = vector.broadcast %cst_70 : f32 to vector<8x128xf32>
    %266 = arith.mulf %265, %264 : vector<8x128xf32>
    %267 = arith.select %7, %266, %264 : vector<8x128xi1>, vector<8x128xf32>
    %268 = arith.negf %267 : vector<8x128xf32>
    %269 = math.exp %268 : vector<8x128xf32>
    %cst_71 = arith.constant 1.000000e+00 : f32
    %270 = vector.broadcast %cst_71 : f32 to vector<8x128xf32>
    %271 = arith.addf %270, %269 : vector<8x128xf32>
    %272 = arith.divf %270, %271 : vector<8x128xf32>
    %cst_72 = arith.constant 2.000000e+00 : f32
    %273 = vector.broadcast %cst_72 : f32 to vector<8x128xf32>
    %274 = arith.mulf %273, %272 : vector<8x128xf32>
    %cst_73 = arith.constant 1.000000e+00 : f32
    %275 = vector.broadcast %cst_73 : f32 to vector<8x128xf32>
    %276 = arith.subf %274, %275 : vector<8x128xf32>
    %277 = arith.select %7, %276, %272 : vector<8x128xi1>, vector<8x128xf32>
    %278 = vector.extract_strided_slice %277 {offsets = [0, 0], sizes = [8, 32], strides = [1, 1]} : vector<8x128xf32> to vector<8x32xf32>
    %279 = vector.extract_strided_slice %277 {offsets = [0, 32], sizes = [8, 32], strides = [1, 1]} : vector<8x128xf32> to vector<8x32xf32>
    %280 = vector.extract_strided_slice %277 {offsets = [0, 64], sizes = [8, 32], strides = [1, 1]} : vector<8x128xf32> to vector<8x32xf32>
    %281 = vector.extract_strided_slice %277 {offsets = [0, 96], sizes = [8, 32], strides = [1, 1]} : vector<8x128xf32> to vector<8x32xf32>
    %282 = arith.mulf %279, %260 : vector<8x32xf32>
    %283 = arith.mulf %278, %280 : vector<8x32xf32>
    %284 = arith.addf %282, %283 : vector<8x32xf32>
    %285 = math.tanh %284 : vector<8x32xf32>
    %286 = arith.mulf %281, %285 : vector<8x32xf32>
    %cst_74 = arith.constant dense<0.000000e+00> : vector<8x128xf32>
    %287 = tpu.matmul %286, %1, %cst_74 {dimension_numbers = #tpu.dot_dimension_numbers<[1], [0], [0], [1], [0, 0, 1, 1], [], []>} : vector<8x32xf32>, vector<32x128xf32>, vector<8x128xf32> -> vector<8x128xf32>
    %288 = arith.addf %219, %287 : vector<8x128xf32>
    %cst_75 = arith.constant 2.000000e+00 : f32
    %289 = vector.broadcast %cst_75 : f32 to vector<8x128xf32>
    %290 = arith.mulf %289, %288 : vector<8x128xf32>
    %291 = arith.select %7, %290, %288 : vector<8x128xi1>, vector<8x128xf32>
    %292 = arith.negf %291 : vector<8x128xf32>
    %293 = math.exp %292 : vector<8x128xf32>
    %cst_76 = arith.constant 1.000000e+00 : f32
    %294 = vector.broadcast %cst_76 : f32 to vector<8x128xf32>
    %295 = arith.addf %294, %293 : vector<8x128xf32>
    %296 = arith.divf %294, %295 : vector<8x128xf32>
    %cst_77 = arith.constant 2.000000e+00 : f32
    %297 = vector.broadcast %cst_77 : f32 to vector<8x128xf32>
    %298 = arith.mulf %297, %296 : vector<8x128xf32>
    %cst_78 = arith.constant 1.000000e+00 : f32
    %299 = vector.broadcast %cst_78 : f32 to vector<8x128xf32>
    %300 = arith.subf %298, %299 : vector<8x128xf32>
    %301 = arith.select %7, %300, %296 : vector<8x128xi1>, vector<8x128xf32>
    %302 = vector.extract_strided_slice %301 {offsets = [0, 0], sizes = [8, 32], strides = [1, 1]} : vector<8x128xf32> to vector<8x32xf32>
    %303 = vector.extract_strided_slice %301 {offsets = [0, 32], sizes = [8, 32], strides = [1, 1]} : vector<8x128xf32> to vector<8x32xf32>
    %304 = vector.extract_strided_slice %301 {offsets = [0, 64], sizes = [8, 32], strides = [1, 1]} : vector<8x128xf32> to vector<8x32xf32>
    %305 = vector.extract_strided_slice %301 {offsets = [0, 96], sizes = [8, 32], strides = [1, 1]} : vector<8x128xf32> to vector<8x32xf32>
    %306 = arith.mulf %303, %284 : vector<8x32xf32>
    %307 = arith.mulf %302, %304 : vector<8x32xf32>
    %308 = arith.addf %306, %307 : vector<8x32xf32>
    %309 = math.tanh %308 : vector<8x32xf32>
    %310 = arith.mulf %305, %309 : vector<8x32xf32>
    %cst_79 = arith.constant dense<0.000000e+00> : vector<8x128xf32>
    %311 = tpu.matmul %310, %1, %cst_79 {dimension_numbers = #tpu.dot_dimension_numbers<[1], [0], [0], [1], [0, 0, 1, 1], [], []>} : vector<8x32xf32>, vector<32x128xf32>, vector<8x128xf32> -> vector<8x128xf32>
    %312 = arith.addf %219, %311 : vector<8x128xf32>
    %cst_80 = arith.constant 2.000000e+00 : f32
    %313 = vector.broadcast %cst_80 : f32 to vector<8x128xf32>
    %314 = arith.mulf %313, %312 : vector<8x128xf32>
    %315 = arith.select %7, %314, %312 : vector<8x128xi1>, vector<8x128xf32>
    %316 = arith.negf %315 : vector<8x128xf32>
    %317 = math.exp %316 : vector<8x128xf32>
    %cst_81 = arith.constant 1.000000e+00 : f32
    %318 = vector.broadcast %cst_81 : f32 to vector<8x128xf32>
    %319 = arith.addf %318, %317 : vector<8x128xf32>
    %320 = arith.divf %318, %319 : vector<8x128xf32>
    %cst_82 = arith.constant 2.000000e+00 : f32
    %321 = vector.broadcast %cst_82 : f32 to vector<8x128xf32>
    %322 = arith.mulf %321, %320 : vector<8x128xf32>
    %cst_83 = arith.constant 1.000000e+00 : f32
    %323 = vector.broadcast %cst_83 : f32 to vector<8x128xf32>
    %324 = arith.subf %322, %323 : vector<8x128xf32>
    %325 = arith.select %7, %324, %320 : vector<8x128xi1>, vector<8x128xf32>
    %326 = vector.extract_strided_slice %325 {offsets = [0, 0], sizes = [8, 32], strides = [1, 1]} : vector<8x128xf32> to vector<8x32xf32>
    %327 = vector.extract_strided_slice %325 {offsets = [0, 32], sizes = [8, 32], strides = [1, 1]} : vector<8x128xf32> to vector<8x32xf32>
    %328 = vector.extract_strided_slice %325 {offsets = [0, 64], sizes = [8, 32], strides = [1, 1]} : vector<8x128xf32> to vector<8x32xf32>
    %329 = vector.extract_strided_slice %325 {offsets = [0, 96], sizes = [8, 32], strides = [1, 1]} : vector<8x128xf32> to vector<8x32xf32>
    %330 = arith.mulf %327, %308 : vector<8x32xf32>
    %331 = arith.mulf %326, %328 : vector<8x32xf32>
    %332 = arith.addf %330, %331 : vector<8x32xf32>
    %333 = math.tanh %332 : vector<8x32xf32>
    %334 = arith.mulf %329, %333 : vector<8x32xf32>
    %cst_84 = arith.constant dense<0.000000e+00> : vector<8x128xf32>
    %335 = tpu.matmul %334, %1, %cst_84 {dimension_numbers = #tpu.dot_dimension_numbers<[1], [0], [0], [1], [0, 0, 1, 1], [], []>} : vector<8x32xf32>, vector<32x128xf32>, vector<8x128xf32> -> vector<8x128xf32>
    %336 = arith.addf %219, %335 : vector<8x128xf32>
    %cst_85 = arith.constant 2.000000e+00 : f32
    %337 = vector.broadcast %cst_85 : f32 to vector<8x128xf32>
    %338 = arith.mulf %337, %336 : vector<8x128xf32>
    %339 = arith.select %7, %338, %336 : vector<8x128xi1>, vector<8x128xf32>
    %340 = arith.negf %339 : vector<8x128xf32>
    %341 = math.exp %340 : vector<8x128xf32>
    %cst_86 = arith.constant 1.000000e+00 : f32
    %342 = vector.broadcast %cst_86 : f32 to vector<8x128xf32>
    %343 = arith.addf %342, %341 : vector<8x128xf32>
    %344 = arith.divf %342, %343 : vector<8x128xf32>
    %cst_87 = arith.constant 2.000000e+00 : f32
    %345 = vector.broadcast %cst_87 : f32 to vector<8x128xf32>
    %346 = arith.mulf %345, %344 : vector<8x128xf32>
    %cst_88 = arith.constant 1.000000e+00 : f32
    %347 = vector.broadcast %cst_88 : f32 to vector<8x128xf32>
    %348 = arith.subf %346, %347 : vector<8x128xf32>
    %349 = arith.select %7, %348, %344 : vector<8x128xi1>, vector<8x128xf32>
    %350 = vector.extract_strided_slice %349 {offsets = [0, 0], sizes = [8, 32], strides = [1, 1]} : vector<8x128xf32> to vector<8x32xf32>
    %351 = vector.extract_strided_slice %349 {offsets = [0, 32], sizes = [8, 32], strides = [1, 1]} : vector<8x128xf32> to vector<8x32xf32>
    %352 = vector.extract_strided_slice %349 {offsets = [0, 64], sizes = [8, 32], strides = [1, 1]} : vector<8x128xf32> to vector<8x32xf32>
    %353 = vector.extract_strided_slice %349 {offsets = [0, 96], sizes = [8, 32], strides = [1, 1]} : vector<8x128xf32> to vector<8x32xf32>
    %354 = arith.mulf %351, %332 : vector<8x32xf32>
    %355 = arith.mulf %350, %352 : vector<8x32xf32>
    %356 = arith.addf %354, %355 : vector<8x32xf32>
    %357 = math.tanh %356 : vector<8x32xf32>
    %358 = arith.mulf %353, %357 : vector<8x32xf32>
    %cst_89 = arith.constant dense<0.000000e+00> : vector<8x128xf32>
    %359 = tpu.matmul %358, %1, %cst_89 {dimension_numbers = #tpu.dot_dimension_numbers<[1], [0], [0], [1], [0, 0, 1, 1], [], []>} : vector<8x32xf32>, vector<32x128xf32>, vector<8x128xf32> -> vector<8x128xf32>
    %360 = arith.addf %219, %359 : vector<8x128xf32>
    %cst_90 = arith.constant 2.000000e+00 : f32
    %361 = vector.broadcast %cst_90 : f32 to vector<8x128xf32>
    %362 = arith.mulf %361, %360 : vector<8x128xf32>
    %363 = arith.select %7, %362, %360 : vector<8x128xi1>, vector<8x128xf32>
    %364 = arith.negf %363 : vector<8x128xf32>
    %365 = math.exp %364 : vector<8x128xf32>
    %cst_91 = arith.constant 1.000000e+00 : f32
    %366 = vector.broadcast %cst_91 : f32 to vector<8x128xf32>
    %367 = arith.addf %366, %365 : vector<8x128xf32>
    %368 = arith.divf %366, %367 : vector<8x128xf32>
    %cst_92 = arith.constant 2.000000e+00 : f32
    %369 = vector.broadcast %cst_92 : f32 to vector<8x128xf32>
    %370 = arith.mulf %369, %368 : vector<8x128xf32>
    %cst_93 = arith.constant 1.000000e+00 : f32
    %371 = vector.broadcast %cst_93 : f32 to vector<8x128xf32>
    %372 = arith.subf %370, %371 : vector<8x128xf32>
    %373 = arith.select %7, %372, %368 : vector<8x128xi1>, vector<8x128xf32>
    %374 = vector.extract_strided_slice %373 {offsets = [0, 0], sizes = [8, 32], strides = [1, 1]} : vector<8x128xf32> to vector<8x32xf32>
    %375 = vector.extract_strided_slice %373 {offsets = [0, 32], sizes = [8, 32], strides = [1, 1]} : vector<8x128xf32> to vector<8x32xf32>
    %376 = vector.extract_strided_slice %373 {offsets = [0, 64], sizes = [8, 32], strides = [1, 1]} : vector<8x128xf32> to vector<8x32xf32>
    %377 = vector.extract_strided_slice %373 {offsets = [0, 96], sizes = [8, 32], strides = [1, 1]} : vector<8x128xf32> to vector<8x32xf32>
    %378 = arith.mulf %375, %356 : vector<8x32xf32>
    %379 = arith.mulf %374, %376 : vector<8x32xf32>
    %380 = arith.addf %378, %379 : vector<8x32xf32>
    %381 = math.tanh %380 : vector<8x32xf32>
    %382 = arith.mulf %377, %381 : vector<8x32xf32>
    %cst_94 = arith.constant dense<0.000000e+00> : vector<8x128xf32>
    %383 = tpu.matmul %382, %1, %cst_94 {dimension_numbers = #tpu.dot_dimension_numbers<[1], [0], [0], [1], [0, 0, 1, 1], [], []>} : vector<8x32xf32>, vector<32x128xf32>, vector<8x128xf32> -> vector<8x128xf32>
    %384 = arith.addf %219, %383 : vector<8x128xf32>
    %cst_95 = arith.constant 2.000000e+00 : f32
    %385 = vector.broadcast %cst_95 : f32 to vector<8x128xf32>
    %386 = arith.mulf %385, %384 : vector<8x128xf32>
    %387 = arith.select %7, %386, %384 : vector<8x128xi1>, vector<8x128xf32>
    %388 = arith.negf %387 : vector<8x128xf32>
    %389 = math.exp %388 : vector<8x128xf32>
    %cst_96 = arith.constant 1.000000e+00 : f32
    %390 = vector.broadcast %cst_96 : f32 to vector<8x128xf32>
    %391 = arith.addf %390, %389 : vector<8x128xf32>
    %392 = arith.divf %390, %391 : vector<8x128xf32>
    %cst_97 = arith.constant 2.000000e+00 : f32
    %393 = vector.broadcast %cst_97 : f32 to vector<8x128xf32>
    %394 = arith.mulf %393, %392 : vector<8x128xf32>
    %cst_98 = arith.constant 1.000000e+00 : f32
    %395 = vector.broadcast %cst_98 : f32 to vector<8x128xf32>
    %396 = arith.subf %394, %395 : vector<8x128xf32>
    %397 = arith.select %7, %396, %392 : vector<8x128xi1>, vector<8x128xf32>
    %398 = vector.extract_strided_slice %397 {offsets = [0, 0], sizes = [8, 32], strides = [1, 1]} : vector<8x128xf32> to vector<8x32xf32>
    %399 = vector.extract_strided_slice %397 {offsets = [0, 32], sizes = [8, 32], strides = [1, 1]} : vector<8x128xf32> to vector<8x32xf32>
    %400 = vector.extract_strided_slice %397 {offsets = [0, 64], sizes = [8, 32], strides = [1, 1]} : vector<8x128xf32> to vector<8x32xf32>
    %401 = vector.extract_strided_slice %397 {offsets = [0, 96], sizes = [8, 32], strides = [1, 1]} : vector<8x128xf32> to vector<8x32xf32>
    %402 = arith.mulf %399, %380 : vector<8x32xf32>
    %403 = arith.mulf %398, %400 : vector<8x32xf32>
    %404 = arith.addf %402, %403 : vector<8x32xf32>
    %405 = math.tanh %404 : vector<8x32xf32>
    %406 = arith.mulf %401, %405 : vector<8x32xf32>
    %407 = tpu.concatenate %238, %262, %286, %310, %334, %358, %382, %406 in 0 : vector<8x32xf32>, vector<8x32xf32>, vector<8x32xf32>, vector<8x32xf32>, vector<8x32xf32>, vector<8x32xf32>, vector<8x32xf32>, vector<8x32xf32> -> vector<64x32xf32>
    %c0_99 = arith.constant 0 : index
    %c0_100 = arith.constant 0 : index
    %408 = vector.load %arg9[%c0_99, %c0_100] : memref<32x4xf32, #tpu.memory_space<vmem>>, vector<32x4xf32>
    %cst_101 = arith.constant dense<0.000000e+00> : vector<64x4xf32>
    %409 = tpu.matmul %407, %408, %cst_101 {dimension_numbers = #tpu.dot_dimension_numbers<[1], [0], [0], [1], [0, 0, 1, 1], [], []>} : vector<64x32xf32>, vector<32x4xf32>, vector<64x4xf32> -> vector<64x4xf32>
    %c0_102 = arith.constant 0 : index
    %c0_103 = arith.constant 0 : index
    %410 = vector.load %arg10[%c0_102, %c0_103] : memref<1x4xf32, #tpu.memory_space<vmem>>, vector<1x4xf32>
    %411 = vector.broadcast %410 : vector<1x4xf32> to vector<64x4xf32>
    %412 = arith.addf %409, %411 : vector<64x4xf32>
    %c0_104 = arith.constant 0 : index
    %c0_105 = arith.constant 0 : index
    %413 = vector.load %arg11[%c0_104, %c0_105] : memref<64x4xf32, #tpu.memory_space<vmem>>, vector<64x4xf32>
    tpu.vector_store %arg11[%c0_104, %c0_105], %412 {strides = array<i32>} : memref<64x4xf32, #tpu.memory_space<vmem>>, vector<64x4xf32>,
    return
  }
}

</mosaic_0001>

<llo_original>
// kernel: tpu_custom_call.1
$region0: #{tpu_custom_call.1}
  #allocation0 [shape = 'u32[]', space=smem, size = 0x4, offset = 0x4, fixed_abs, tag = 'smem constant byte address 0x4 - core index']
  #allocation1 [shape = 'u32[144,128]{1,0:T(1,128)}', space=vmem, size = 0x12000, scoped, tag = 'internal scratch']
  %s0 = inlined_call_operand.vmem [shape: f32[64,4], index: 0, kind: input, shape index: {}]
  %s1 = inlined_call_operand.vmem [shape: f32[4,128], index: 1, kind: input, shape index: {}]
  %s2 = inlined_call_operand.vmem [shape: f32[32,128], index: 2, kind: input, shape index: {}]
  %s3 = inlined_call_operand.vmem [shape: f32[1,128], index: 3, kind: input, shape index: {}]
  %s4 = inlined_call_operand.vmem [shape: f32[32,16], index: 4, kind: input, shape index: {}]
  %s5 = inlined_call_operand.vmem [shape: f32[1,16], index: 5, kind: input, shape index: {}]
  %s6 = inlined_call_operand.vmem [shape: f32[16,128], index: 6, kind: input, shape index: {}]
  %s7 = inlined_call_operand.vmem [shape: f32[1,128], index: 7, kind: input, shape index: {}]
  %s8 = inlined_call_operand.vmem [shape: f32[32,128], index: 8, kind: input, shape index: {}]
  %s9 = inlined_call_operand.vmem [shape: f32[32,4], index: 9, kind: input, shape index: {}]
  %s10 = inlined_call_operand.vmem [shape: f32[1,4], index: 10, kind: input, shape index: {}]
  %s11 = inlined_call_operand.vmem [shape: f32[64,4], index: 11, kind: output, shape index: {0}]
  %s12 = inlined_call_operand.hbm [shape: f32[8,16], index: 12, kind: output, shape index: {1}]
  %13 = xla_tuple %s11, %s12
  %s14 = sld [smem:[#allocation0]]
  $region62: #{tpu_custom_call.1} parent=0
    _
  %s16 = ssub.s32 1, %s14
  %s17 = scalar_select 0, %s16, %s14
  $region1: #{tpu_custom_call.1} parent=0
    #allocation2 [shape = 'u8[4096]{0}', space=vmem, size = 0x1000, scoped, tag = 'output window, operand 1, single buffered']
    #allocation3 [shape = 's32[1]{0}', space=sflag, size = 0x4, scoped, tag = 'scoped memory for tpu_custom_call.1']
    %18 = vsyncpa [#allocation3], 0
    // Predicated region
    $region2: #{tpu_custom_call.1} parent=1 // pred_check
      _
    $region3: #{tpu_custom_call.1} parent=1 // pred_check_branch
      %20 = sbr.rel (0) target = $region5
    $region4: #{tpu_custom_call.1} parent=1 // pred_region
      _
    $region5: #{tpu_custom_call.1} parent=1 // pred_fallthru
      _
    // Predicated region
    $region6: #{tpu_custom_call.1} parent=1 // pred_check
      _
    $region7: #{tpu_custom_call.1} parent=1 // pred_check_branch
      %22 = sbr.rel (0) target = $region9
    $region8: #{tpu_custom_call.1} parent=1 // pred_region
      _
    $region9: #{tpu_custom_call.1} parent=1 // pred_fallthru
      _
    // Predicated region
    $region10: #{tpu_custom_call.1} parent=1 // pred_check
      _
    $region11: #{tpu_custom_call.1} parent=1 // pred_check_branch
      %24 = sbr.rel (0) target = $region13
    $region12: #{tpu_custom_call.1} parent=1 // pred_region
      _
    $region13: #{tpu_custom_call.1} parent=1 // pred_fallthru
      _
    // Predicated region
    $region14: #{tpu_custom_call.1} parent=1 // pred_check
      _
    $region15: #{tpu_custom_call.1} parent=1 // pred_check_branch
      %26 = sbr.rel (0) target = $region17
    $region16: #{tpu_custom_call.1} parent=1 // pred_region
      _
    $region17: #{tpu_custom_call.1} parent=1 // pred_fallthru
      _
    // Predicated region
    $region18: #{tpu_custom_call.1} parent=1 // pred_check
      _
    $region19: #{tpu_custom_call.1} parent=1 // pred_check_branch
      %28 = sbr.rel (0) target = $region21
    $region20: #{tpu_custom_call.1} parent=1 // pred_region
      _
    $region21: #{tpu_custom_call.1} parent=1 // pred_fallthru
      _
    // Predicated region
    $region22: #{tpu_custom_call.1} parent=1 // pred_check
      _
    $region23: #{tpu_custom_call.1} parent=1 // pred_check_branch
      %30 = sbr.rel (0) target = $region25
    $region24: #{tpu_custom_call.1} parent=1 // pred_region
      _
    $region25: #{tpu_custom_call.1} parent=1 // pred_fallthru
      _
    // Predicated region
    $region26: #{tpu_custom_call.1} parent=1 // pred_check
      _
    $region27: #{tpu_custom_call.1} parent=1 // pred_check_branch
      %32 = sbr.rel (0) target = $region29
    $region28: #{tpu_custom_call.1} parent=1 // pred_region
      _
    $region29: #{tpu_custom_call.1} parent=1 // pred_fallthru
      _
    // Predicated region
    $region30: #{tpu_custom_call.1} parent=1 // pred_check
      _
    $region31: #{tpu_custom_call.1} parent=1 // pred_check_branch
      %34 = sbr.rel (0) target = $region33
    $region32: #{tpu_custom_call.1} parent=1 // pred_region
      _
    $region33: #{tpu_custom_call.1} parent=1 // pred_fallthru
      _
    // Predicated region
    $region34: #{tpu_custom_call.1} parent=1 // pred_check
      _
    $region35: #{tpu_custom_call.1} parent=1 // pred_check_branch
      %36 = sbr.rel (0) target = $region37
    $region36: #{tpu_custom_call.1} parent=1 // pred_region
      _
    $region37: #{tpu_custom_call.1} parent=1 // pred_fallthru
      _
    // Predicated region
    $region38: #{tpu_custom_call.1} parent=1 // pred_check
      _
    $region39: #{tpu_custom_call.1} parent=1 // pred_check_branch
      %38 = sbr.rel (0) target = $region41
    $region40: #{tpu_custom_call.1} parent=1 // pred_region
      _
    $region41: #{tpu_custom_call.1} parent=1 // pred_fallthru
      _
    // Predicated region
    $region42: #{tpu_custom_call.1} parent=1 // pred_check
      _
    $region43: #{tpu_custom_call.1} parent=1 // pred_check_branch
      %40 = sbr.rel (0) target = $region45
    $region44: #{tpu_custom_call.1} parent=1 // pred_region
      _
    $region45: #{tpu_custom_call.1} parent=1 // pred_fallthru
      _
    %v41 = vld [vmem:[%s2] sm:$0xff]
    %v42 = vld [vmem:[%s2 + $0x8] sm:$0xff]
    %v43 = vld [vmem:[%s2 + $0x10] sm:$0xff]
    %v44 = vld [vmem:[%s2 + $0x18] sm:$0xff]
    %v45 = vld [vmem:[%s8] sm:$0xff]
    %v46 = vld [vmem:[%s8 + $0x8] sm:$0xff]
    %v47 = vld [vmem:[%s8 + $0x10] sm:$0xff]
    %v48 = vld [vmem:[%s8 + $0x18] sm:$0xff]
    %v49 = vlaneseq
    %v50 = vand.u32 %v49, 127
    %vm51 = vcmp.ge.s32.totalorder %v50, 64
    %vm52 = vcmp.lt.s32.totalorder %v50, 96
    %vm53 = vmand %vm51, %vm52
    %v54 = vld [vmem:[%s0] sm:$0xff]
    %v55 = vld [vmem:[%s0 + $0x8] sm:$0xff]
    %v56 = vld [vmem:[%s0 + $0x10] sm:$0xff]
    %v57 = vld [vmem:[%s0 + $0x18] sm:$0xff]
    %v58 = vld [vmem:[%s0 + $0x20] sm:$0xff]
    %v59 = vld [vmem:[%s0 + $0x28] sm:$0xff]
    %v60 = vld [vmem:[%s0 + $0x30] sm:$0xff]
    %v61 = vld [vmem:[%s0 + $0x38] sm:$0xff]
    %v62 = vld [vmem:[%s1] sm:$0xf]
    %v63 = vld [vmem:[%s3] sm:$0x1]
    %v65 = vlaneseq
    %v66 = vshrl.u32 %v65, 7
    %v67 = vsub.s32 0, %v66
    %v68 = vrot.slane %v63, %v67
    %vm70 = vcmask 31744
    %v72 = vsel %vm70, %v54, 0
    %v75 = vsel %vm70, %v55, 0
    %v78 = vsel %vm70, %v56, 0
    %v81 = vsel %vm70, %v57, 0
    %v84 = vsel %vm70, %v58, 0
    %v87 = vsel %vm70, %v59, 0
    %v90 = vsel %vm70, %v60, 0
    %v93 = vsel %vm70, %v61, 0
    %vm95 = vcmask 1043456
    %v97 = vsel %vm95, %v62, 0
    %99 = vmatprep.subr.mxu0 0.0
    %100 = vmatpush1.msra.mxu0 %v97
    %101 = vmatprep.subr.mxu0 0.0
    %102 = vmatpush1.msra.mxu0 0.0
    %103 = vmatprep.subr.mxu0 0.0
    %104 = vmatpush1.msra.mxu0 0.0
    %105 = vmatprep.subr.mxu0 0.0
    %106 = vmatpush1.msra.mxu0 0.0
    %107 = vmatprep.subr.mxu0 0.0
    %108 = vmatpush1.msra.mxu0 0.0
    %109 = vmatprep.subr.mxu0 0.0
    %110 = vmatpush1.msra.mxu0 0.0
    %111 = vmatprep.subr.mxu0 0.0
    %112 = vmatpush1.msra.mxu0 0.0
    %113 = vmatprep.subr.mxu0 0.0
    %114 = vmatpush1.msra.mxu0 0.0
    %115 = vmatprep.subr.mxu0 0.0
    %116 = vmatpush1.msra.mxu0 0.0
    %117 = vmatprep.subr.mxu0 0.0
    %118 = vmatpush1.msra.mxu0 0.0
    %119 = vmatprep.subr.mxu0 0.0
    %120 = vmatpush1.msra.mxu0 0.0
    %121 = vmatprep.subr.mxu0 0.0
    %122 = vmatpush1.msra.mxu0 0.0
    %123 = vmatprep.subr.mxu0 0.0
    %124 = vmatpush1.msra.mxu0 0.0
    %125 = vmatprep.subr.mxu0 0.0
    %126 = vmatpush1.msra.mxu0 0.0
    %127 = vmatprep.subr.mxu0 0.0
    %128 = vmatpush1.msra.mxu0 0.0
    %129 = vmatprep.subr.mxu0 0.0
    %130 = vmatpush1.msra.mxu0 0.0
    %131 = vmatprep.subr.mxu0 0.0
    %132 = vmatpush1.msra.mxu0 0.0
    %133 = vmatprep.subr.mxu0 0.0
    %134 = vmatpush1.msra.mxu0 0.0
    %135 = vmatprep.subr.mxu0 0.0
    %136 = vmatpush1.msra.mxu0 0.0
    %137 = vmatprep.subr.mxu0 0.0
    %138 = vmatpush1.msra.mxu0 0.0
    %139 = vmatprep.subr.mxu0 0.0
    %140 = vmatpush1.msra.mxu0 0.0
    %141 = vmatprep.subr.mxu0 0.0
    %142 = vmatpush1.msra.mxu0 0.0
    %143 = vmatprep.subr.mxu0 0.0
    %144 = vmatpush1.msra.mxu0 0.0
    %145 = vmatprep.subr.mxu0 0.0
    %146 = vmatpush1.msra.mxu0 0.0
    %147 = vmatprep.subr.mxu0 0.0
    %148 = vmatpush1.msra.mxu0 0.0
    %149 = vmatprep.subr.mxu0 0.0
    %150 = vmatpush1.msra.mxu0 0.0
    %151 = vmatprep.subr.mxu0 0.0
    %152 = vmatpush1.msra.mxu0 0.0
    %153 = vmatprep.subr.mxu0 0.0
    %154 = vmatpush1.msra.mxu0 0.0
    %155 = vmatprep.subr.mxu0 0.0
    %156 = vmatpush1.msra.mxu0 0.0
    %157 = vmatprep.subr.mxu0 0.0
    %158 = vmatpush1.msra.mxu0 0.0
    %159 = vmatprep.subr.mxu0 0.0
    %160 = vmatpush1.msra.mxu0 0.0
    %161 = vmatprep.subr.mxu0 0.0
    %162 = vmatpush1.msra.mxu0 0.0
    %163 = vmatprep.mubr.f32.mxu0 0.0
    %164 = vmatmul.mubr.f32.gmra.mrb[0].mxu0 %v72
    %v165 = vpop.f32.mrb[0].mxu0
    %v166 = vadd.f32 %v68, %v165
    %v167 = vpop.f32.mrb[0].mxu0
    %168 = vmatprep.mubr.f32.mxu0 0.0
    %169 = vmatmul.mubr.f32.gmra.mrb[0].mxu0 %v75
    %v170 = vpop.f32.mrb[0].mxu0
    %v171 = vadd.f32 %v68, %v170
    %v172 = vpop.f32.mrb[0].mxu0
    %173 = vmatprep.mubr.f32.mxu0 0.0
    %174 = vmatmul.mubr.f32.gmra.mrb[0].mxu0 %v78
    %v175 = vpop.f32.mrb[0].mxu0
    %v176 = vadd.f32 %v68, %v175
    %v177 = vpop.f32.mrb[0].mxu0
    %178 = vmatprep.mubr.f32.mxu0 0.0
    %179 = vmatmul.mubr.f32.gmra.mrb[0].mxu0 %v81
    %v180 = vpop.f32.mrb[0].mxu0
    %v181 = vadd.f32 %v68, %v180
    %v182 = vpop.f32.mrb[0].mxu0
    %183 = vmatprep.mubr.f32.mxu0 0.0
    %184 = vmatmul.mubr.f32.gmra.mrb[0].mxu0 %v84
    %v185 = vpop.f32.mrb[0].mxu0
    %v186 = vadd.f32 %v68, %v185
    %v187 = vpop.f32.mrb[0].mxu0
    %188 = vmatprep.mubr.f32.mxu0 0.0
    %189 = vmatmul.mubr.f32.gmra.mrb[0].mxu0 %v87
    %v190 = vpop.f32.mrb[0].mxu0
    %v191 = vadd.f32 %v68, %v190
    %v192 = vpop.f32.mrb[0].mxu0
    %193 = vmatprep.mubr.f32.mxu0 0.0
    %194 = vmatmul.mubr.f32.gmra.mrb[0].mxu0 %v90
    %v195 = vpop.f32.mrb[0].mxu0
    %v196 = vadd.f32 %v68, %v195
    %v197 = vpop.f32.mrb[0].mxu0
    %198 = vmatprep.mubr.f32.mxu0 0.0
    %199 = vmatmul.mubr.f32.gmra.mrb[0].mxu0 %v93
    %v200 = vpop.f32.mrb[0].mxu0
    %v201 = vadd.f32 %v68, %v200
    %v202 = vpop.f32.mrb[0].mxu0
    %203 = vdwg.mxu0
    %v204 = vmul.f32 %v166, 2.0
    %v205 = vsel %vm53, %v204, %v166
    %v206 = vxor.u32 %v205, 2147483648
    %v207 = vmul.f32 %v206, 1.442695
    %v208 = vpow.pop %v207
    %v209 = vadd.f32 %v208, 1.0
    %v210 = vrcp.pop %v209
    %v211 = vmul.f32 1.0, %v210
    %v212 = vmul.f32 %v211, 2.0
    %v213 = vsub.f32 %v212, 1.0
    %v214 = vsel %vm53, %v213, %v211
    %216 = vrot.lane.b32.xlu0 %v214, 64
    %v217 = vpop.permute.xlu0 %216
    %v219 = vmul.f32 %v214, %v217
    %v220 = vtanh.pop %v219
    %222 = vrot.lane.b32.xlu0 %v220, 96
    %v223 = vpop.permute.xlu0 %222
    %v225 = vmul.f32 %v214, %v223
    %227 = vrot.lane.b32.xlu0 %v225, 32
    %v228 = vpop.permute.xlu0 %227
    %vm229 = vcmask 261120
    %v230 = vsel %vm229, %v228, 0
    %232 = vmatprep.subr.mxu0 0.0
    %233 = vmatpush1.msra.mxu0 %v41
    %234 = vmatprep.subr.mxu0 0.0
    %235 = vmatpush1.msra.mxu0 %v42
    %236 = vmatprep.subr.mxu0 0.0
    %237 = vmatpush1.msra.mxu0 %v43
    %238 = vmatprep.subr.mxu0 0.0
    %239 = vmatpush1.msra.mxu0 %v44
    %240 = vmatprep.subr.mxu0 0.0
    %241 = vmatpush1.msra.mxu0 0.0
    %242 = vmatprep.subr.mxu0 0.0
    %243 = vmatpush1.msra.mxu0 0.0
    %244 = vmatprep.subr.mxu0 0.0
    %245 = vmatpush1.msra.mxu0 0.0
    %246 = vmatprep.subr.mxu0 0.0
    %247 = vmatpush1.msra.mxu0 0.0
    %248 = vmatprep.subr.mxu0 0.0
    %249 = vmatpush1.msra.mxu0 0.0
    %250 = vmatprep.subr.mxu0 0.0
    %251 = vmatpush1.msra.mxu0 0.0
    %252 = vmatprep.subr.mxu0 0.0
    %253 = vmatpush1.msra.mxu0 0.0
    %254 = vmatprep.subr.mxu0 0.0
    %255 = vmatpush1.msra.mxu0 0.0
    %256 = vmatprep.subr.mxu0 0.0
    %257 = vmatpush1.msra.mxu0 0.0
    %258 = vmatprep.subr.mxu0 0.0
    %259 = vmatpush1.msra.mxu0 0.0
    %260 = vmatprep.subr.mxu0 0.0
    %261 = vmatpush1.msra.mxu0 0.0
    %262 = vmatprep.subr.mxu0 0.0
    %263 = vmatpush1.msra.mxu0 0.0
    %264 = vmatprep.subr.mxu0 0.0
    %265 = vmatpush1.msra.mxu0 0.0
    %266 = vmatprep.subr.mxu0 0.0
    %267 = vmatpush1.msra.mxu0 0.0
    %268 = vmatprep.subr.mxu0 0.0
    %269 = vmatpush1.msra.mxu0 0.0
    %270 = vmatprep.subr.mxu0 0.0
    %271 = vmatpush1.msra.mxu0 0.0
    %272 = vmatprep.subr.mxu0 0.0
    %273 = vmatpush1.msra.mxu0 0.0
    %274 = vmatprep.subr.mxu0 0.0
    %275 = vmatpush1.msra.mxu0 0.0
    %276 = vmatprep.subr.mxu0 0.0
    %277 = vmatpush1.msra.mxu0 0.0
    %278 = vmatprep.subr.mxu0 0.0
    %279 = vmatpush1.msra.mxu0 0.0
    %280 = vmatprep.subr.mxu0 0.0
    %281 = vmatpush1.msra.mxu0 0.0
    %282 = vmatprep.subr.mxu0 0.0
    %283 = vmatpush1.msra.mxu0 0.0
    %284 = vmatprep.subr.mxu0 0.0
    %285 = vmatpush1.msra.mxu0 0.0
    %286 = vmatprep.subr.mxu0 0.0
    %287 = vmatpush1.msra.mxu0 0.0
    %288 = vmatprep.subr.mxu0 0.0
    %289 = vmatpush1.msra.mxu0 0.0
    %290 = vmatprep.subr.mxu0 0.0
    %291 = vmatpush1.msra.mxu0 0.0
    %292 = vmatprep.subr.mxu0 0.0
    %293 = vmatpush1.msra.mxu0 0.0
    %294 = vmatprep.subr.mxu0 0.0
    %295 = vmatpush1.msra.mxu0 0.0
    %296 = vmatprep.mubr.f32.mxu0 0.0
    %297 = vmatmul.mubr.f32.gmra.mrb[0].mxu0 %v230
    %v298 = vpop.f32.mrb[0].mxu0
    %v299 = vadd.f32 0.0, %v298
    %v300 = vpop.f32.mrb[0].mxu0
    %301 = vdwg.mxu0
    %v302 = vadd.f32 %v171, %v299
    %v303 = vmul.f32 %v302, 2.0
    %v304 = vsel %vm53, %v303, %v302
    %v305 = vxor.u32 %v304, 2147483648
    %v306 = vmul.f32 %v305, 1.442695
    %v307 = vpow.pop %v306
    %v308 = vadd.f32 %v307, 1.0
    %v309 = vrcp.pop %v308
    %v310 = vmul.f32 1.0, %v309
    %v311 = vmul.f32 %v310, 2.0
    %v312 = vsub.f32 %v311, 1.0
    %v313 = vsel %vm53, %v312, %v310
    %315 = vrot.lane.b32.xlu0 %v219, 32
    %v316 = vpop.permute.xlu0 %315
    %v318 = vmul.f32 %v313, %v316
    %320 = vrot.lane.b32.xlu0 %v313, 64
    %v321 = vpop.permute.xlu0 %320
    %v323 = vmul.f32 %v313, %v321
    %325 = vrot.lane.b32.xlu0 %v323, 32
    %v326 = vpop.permute.xlu0 %325
    %v328 = vadd.f32 %v318, %v326
    %v329 = vtanh.pop %v328
    %331 = vrot.lane.b32.xlu0 %v329, 64
    %v332 = vpop.permute.xlu0 %331
    %v334 = vmul.f32 %v313, %v332
    %336 = vrot.lane.b32.xlu0 %v334, 32
    %v337 = vpop.permute.xlu0 %336
    %v338 = vsel %vm229, %v337, 0
    %340 = vmatprep.subr.mxu0 0.0
    %341 = vmatpush1.msra.mxu0 %v41
    %342 = vmatprep.subr.mxu0 0.0
    %343 = vmatpush1.msra.mxu0 %v42
    %344 = vmatprep.subr.mxu0 0.0
    %345 = vmatpush1.msra.mxu0 %v43
    %346 = vmatprep.subr.mxu0 0.0
    %347 = vmatpush1.msra.mxu0 %v44
    %348 = vmatprep.subr.mxu0 0.0
    %349 = vmatpush1.msra.mxu0 0.0
    %350 = vmatprep.subr.mxu0 0.0
    %351 = vmatpush1.msra.mxu0 0.0
    %352 = vmatprep.subr.mxu0 0.0
    %353 = vmatpush1.msra.mxu0 0.0
    %354 = vmatprep.subr.mxu0 0.0
    %355 = vmatpush1.msra.mxu0 0.0
    %356 = vmatprep.subr.mxu0 0.0
    %357 = vmatpush1.msra.mxu0 0.0
    %358 = vmatprep.subr.mxu0 0.0
    %359 = vmatpush1.msra.mxu0 0.0
    %360 = vmatprep.subr.mxu0 0.0
    %361 = vmatpush1.msra.mxu0 0.0
    %362 = vmatprep.subr.mxu0 0.0
    %363 = vmatpush1.msra.mxu0 0.0
    %364 = vmatprep.subr.mxu0 0.0
    %365 = vmatpush1.msra.mxu0 0.0
    %366 = vmatprep.subr.mxu0 0.0
    %367 = vmatpush1.msra.mxu0 0.0
    %368 = vmatprep.subr.mxu0 0.0
    %369 = vmatpush1.msra.mxu0 0.0
    %370 = vmatprep.subr.mxu0 0.0
    %371 = vmatpush1.msra.mxu0 0.0
    %372 = vmatprep.subr.mxu0 0.0
    %373 = vmatpush1.msra.mxu0 0.0
    %374 = vmatprep.subr.mxu0 0.0
    %375 = vmatpush1.msra.mxu0 0.0
    %376 = vmatprep.subr.mxu0 0.0
    %377 = vmatpush1.msra.mxu0 0.0
    %378 = vmatprep.subr.mxu0 0.0
    %379 = vmatpush1.msra.mxu0 0.0
    %380 = vmatprep.subr.mxu0 0.0
    %381 = vmatpush1.msra.mxu0 0.0
    %382 = vmatprep.subr.mxu0 0.0
    %383 = vmatpush1.msra.mxu0 0.0
    %384 = vmatprep.subr.mxu0 0.0
    %385 = vmatpush1.msra.mxu0 0.0
    %386 = vmatprep.subr.mxu0 0.0
    %387 = vmatpush1.msra.mxu0 0.0
    %388 = vmatprep.subr.mxu0 0.0
    %389 = vmatpush1.msra.mxu0 0.0
    %390 = vmatprep.subr.mxu0 0.0
    %391 = vmatpush1.msra.mxu0 0.0
    %392 = vmatprep.subr.mxu0 0.0
    %393 = vmatpush1.msra.mxu0 0.0
    %394 = vmatprep.subr.mxu0 0.0
    %395 = vmatpush1.msra.mxu0 0.0
    %396 = vmatprep.subr.mxu0 0.0
    %397 = vmatpush1.msra.mxu0 0.0
    %398 = vmatprep.subr.mxu0 0.0
    %399 = vmatpush1.msra.mxu0 0.0
    %400 = vmatprep.subr.mxu0 0.0
    %401 = vmatpush1.msra.mxu0 0.0
    %402 = vmatprep.subr.mxu0 0.0
    %403 = vmatpush1.msra.mxu0 0.0
    %404 = vmatprep.mubr.f32.mxu0 0.0
    %405 = vmatmul.mubr.f32.gmra.mrb[0].mxu0 %v338
    %v406 = vpop.f32.mrb[0].mxu0
    %v407 = vadd.f32 0.0, %v406
    %v408 = vpop.f32.mrb[0].mxu0
    %409 = vdwg.mxu0
    %v410 = vadd.f32 %v176, %v407
    %v411 = vmul.f32 %v410, 2.0
    %v412 = vsel %vm53, %v411, %v410
    %v413 = vxor.u32 %v412, 2147483648
    %v414 = vmul.f32 %v413, 1.442695
    %v415 = vpow.pop %v414
    %v416 = vadd.f32 %v415, 1.0
    %v417 = vrcp.pop %v416
    %v418 = vmul.f32 1.0, %v417
    %v419 = vmul.f32 %v418, 2.0
    %v420 = vsub.f32 %v419, 1.0
    %v421 = vsel %vm53, %v420, %v418
    %v422 = vmul.f32 %v421, %v328
    %424 = vrot.lane.b32.xlu0 %v421, 64
    %v425 = vpop.permute.xlu0 %424
    %v427 = vmul.f32 %v421, %v425
    %429 = vrot.lane.b32.xlu0 %v427, 32
    %v430 = vpop.permute.xlu0 %429
    %v432 = vadd.f32 %v422, %v430
    %v433 = vtanh.pop %v432
    %435 = vrot.lane.b32.xlu0 %v433, 64
    %v436 = vpop.permute.xlu0 %435
    %v438 = vmul.f32 %v421, %v436
    %440 = vrot.lane.b32.xlu0 %v438, 32
    %v441 = vpop.permute.xlu0 %440
    %v442 = vsel %vm229, %v441, 0
    %444 = vmatprep.subr.mxu0 0.0
    %445 = vmatpush1.msra.mxu0 %v41
    %446 = vmatprep.subr.mxu0 0.0
    %447 = vmatpush1.msra.mxu0 %v42
    %448 = vmatprep.subr.mxu0 0.0
    %449 = vmatpush1.msra.mxu0 %v43
    %450 = vmatprep.subr.mxu0 0.0
    %451 = vmatpush1.msra.mxu0 %v44
    %452 = vmatprep.subr.mxu0 0.0
    %453 = vmatpush1.msra.mxu0 0.0
    %454 = vmatprep.subr.mxu0 0.0
    %455 = vmatpush1.msra.mxu0 0.0
    %456 = vmatprep.subr.mxu0 0.0
    %457 = vmatpush1.msra.mxu0 0.0
    %458 = vmatprep.subr.mxu0 0.0
    %459 = vmatpush1.msra.mxu0 0.0
    %460 = vmatprep.subr.mxu0 0.0
    %461 = vmatpush1.msra.mxu0 0.0
    %462 = vmatprep.subr.mxu0 0.0
    %463 = vmatpush1.msra.mxu0 0.0
    %464 = vmatprep.subr.mxu0 0.0
    %465 = vmatpush1.msra.mxu0 0.0
    %466 = vmatprep.subr.mxu0 0.0
    %467 = vmatpush1.msra.mxu0 0.0
    %468 = vmatprep.subr.mxu0 0.0
    %469 = vmatpush1.msra.mxu0 0.0
    %470 = vmatprep.subr.mxu0 0.0
    %471 = vmatpush1.msra.mxu0 0.0
    %472 = vmatprep.subr.mxu0 0.0
    %473 = vmatpush1.msra.mxu0 0.0
    %474 = vmatprep.subr.mxu0 0.0
    %475 = vmatpush1.msra.mxu0 0.0
    %476 = vmatprep.subr.mxu0 0.0
    %477 = vmatpush1.msra.mxu0 0.0
    %478 = vmatprep.subr.mxu0 0.0
    %479 = vmatpush1.msra.mxu0 0.0
    %480 = vmatprep.subr.mxu0 0.0
    %481 = vmatpush1.msra.mxu0 0.0
    %482 = vmatprep.subr.mxu0 0.0
    %483 = vmatpush1.msra.mxu0 0.0
    %484 = vmatprep.subr.mxu0 0.0
    %485 = vmatpush1.msra.mxu0 0.0
    %486 = vmatprep.subr.mxu0 0.0
    %487 = vmatpush1.msra.mxu0 0.0
    %488 = vmatprep.subr.mxu0 0.0
    %489 = vmatpush1.msra.mxu0 0.0
    %490 = vmatprep.subr.mxu0 0.0
    %491 = vmatpush1.msra.mxu0 0.0
    %492 = vmatprep.subr.mxu0 0.0
    %493 = vmatpush1.msra.mxu0 0.0
    %494 = vmatprep.subr.mxu0 0.0
    %495 = vmatpush1.msra.mxu0 0.0
    %496 = vmatprep.subr.mxu0 0.0
    %497 = vmatpush1.msra.mxu0 0.0
    %498 = vmatprep.subr.mxu0 0.0
    %499 = vmatpush1.msra.mxu0 0.0
    %500 = vmatprep.subr.mxu0 0.0
    %501 = vmatpush1.msra.mxu0 0.0
    %502 = vmatprep.subr.mxu0 0.0
    %503 = vmatpush1.msra.mxu0 0.0
    %504 = vmatprep.subr.mxu0 0.0
    %505 = vmatpush1.msra.mxu0 0.0
    %506 = vmatprep.subr.mxu0 0.0
    %507 = vmatpush1.msra.mxu0 0.0
    %508 = vmatprep.mubr.f32.mxu0 0.0
    %509 = vmatmul.mubr.f32.gmra.mrb[0].mxu0 %v442
    %v510 = vpop.f32.mrb[0].mxu0
    %v511 = vadd.f32 0.0, %v510
    %v512 = vpop.f32.mrb[0].mxu0
    %513 = vdwg.mxu0
    %v514 = vadd.f32 %v181, %v511
    %v515 = vmul.f32 %v514, 2.0
    %v516 = vsel %vm53, %v515, %v514
    %v517 = vxor.u32 %v516, 2147483648
    %v518 = vmul.f32 %v517, 1.442695
    %v519 = vpow.pop %v518
    %v520 = vadd.f32 %v519, 1.0
    %v521 = vrcp.pop %v520
    %v522 = vmul.f32 1.0, %v521
    %v523 = vmul.f32 %v522, 2.0
    %v524 = vsub.f32 %v523, 1.0
    %v525 = vsel %vm53, %v524, %v522
    %v526 = vmul.f32 %v525, %v432
    %528 = vrot.lane.b32.xlu0 %v525, 64
    %v529 = vpop.permute.xlu0 %528
    %v531 = vmul.f32 %v525, %v529
    %533 = vrot.lane.b32.xlu0 %v531, 32
    %v534 = vpop.permute.xlu0 %533
    %v536 = vadd.f32 %v526, %v534
    %v537 = vtanh.pop %v536
    %539 = vrot.lane.b32.xlu0 %v537, 64
    %v540 = vpop.permute.xlu0 %539
    %v542 = vmul.f32 %v525, %v540
    %544 = vrot.lane.b32.xlu0 %v542, 32
    %v545 = vpop.permute.xlu0 %544
    %v546 = vsel %vm229, %v545, 0
    %548 = vmatprep.subr.mxu0 0.0
    %549 = vmatpush1.msra.mxu0 %v41
    %550 = vmatprep.subr.mxu0 0.0
    %551 = vmatpush1.msra.mxu0 %v42
    %552 = vmatprep.subr.mxu0 0.0
    %553 = vmatpush1.msra.mxu0 %v43
    %554 = vmatprep.subr.mxu0 0.0
    %555 = vmatpush1.msra.mxu0 %v44
    %556 = vmatprep.subr.mxu0 0.0
    %557 = vmatpush1.msra.mxu0 0.0
    %558 = vmatprep.subr.mxu0 0.0
    %559 = vmatpush1.msra.mxu0 0.0
    %560 = vmatprep.subr.mxu0 0.0
    %561 = vmatpush1.msra.mxu0 0.0
    %562 = vmatprep.subr.mxu0 0.0
    %563 = vmatpush1.msra.mxu0 0.0
    %564 = vmatprep.subr.mxu0 0.0
    %565 = vmatpush1.msra.mxu0 0.0
    %566 = vmatprep.subr.mxu0 0.0
    %567 = vmatpush1.msra.mxu0 0.0
    %568 = vmatprep.subr.mxu0 0.0
    %569 = vmatpush1.msra.mxu0 0.0
    %570 = vmatprep.subr.mxu0 0.0
    %571 = vmatpush1.msra.mxu0 0.0
    %572 = vmatprep.subr.mxu0 0.0
    %573 = vmatpush1.msra.mxu0 0.0
    %574 = vmatprep.subr.mxu0 0.0
    %575 = vmatpush1.msra.mxu0 0.0
    %576 = vmatprep.subr.mxu0 0.0
    %577 = vmatpush1.msra.mxu0 0.0
    %578 = vmatprep.subr.mxu0 0.0
    %579 = vmatpush1.msra.mxu0 0.0
    %580 = vmatprep.subr.mxu0 0.0
    %581 = vmatpush1.msra.mxu0 0.0
    %582 = vmatprep.subr.mxu0 0.0
    %583 = vmatpush1.msra.mxu0 0.0
    %584 = vmatprep.subr.mxu0 0.0
    %585 = vmatpush1.msra.mxu0 0.0
    %586 = vmatprep.subr.mxu0 0.0
    %587 = vmatpush1.msra.mxu0 0.0
    %588 = vmatprep.subr.mxu0 0.0
    %589 = vmatpush1.msra.mxu0 0.0
    %590 = vmatprep.subr.mxu0 0.0
    %591 = vmatpush1.msra.mxu0 0.0
    %592 = vmatprep.subr.mxu0 0.0
    %593 = vmatpush1.msra.mxu0 0.0
    %594 = vmatprep.subr.mxu0 0.0
    %595 = vmatpush1.msra.mxu0 0.0
    %596 = vmatprep.subr.mxu0 0.0
    %597 = vmatpush1.msra.mxu0 0.0
    %598 = vmatprep.subr.mxu0 0.0
    %599 = vmatpush1.msra.mxu0 0.0
    %600 = vmatprep.subr.mxu0 0.0
    %601 = vmatpush1.msra.mxu0 0.0
    %602 = vmatprep.subr.mxu0 0.0
    %603 = vmatpush1.msra.mxu0 0.0
    %604 = vmatprep.subr.mxu0 0.0
    %605 = vmatpush1.msra.mxu0 0.0
    %606 = vmatprep.subr.mxu0 0.0
    %607 = vmatpush1.msra.mxu0 0.0
    %608 = vmatprep.subr.mxu0 0.0
    %609 = vmatpush1.msra.mxu0 0.0
    %610 = vmatprep.subr.mxu0 0.0
    %611 = vmatpush1.msra.mxu0 0.0
    %612 = vmatprep.mubr.f32.mxu0 0.0
    %613 = vmatmul.mubr.f32.gmra.mrb[0].mxu0 %v546
    %v614 = vpop.f32.mrb[0].mxu0
    %v615 = vadd.f32 0.0, %v614
    %v616 = vpop.f32.mrb[0].mxu0
    %617 = vdwg.mxu0
    %v618 = vadd.f32 %v186, %v615
    %v619 = vmul.f32 %v618, 2.0
    %v620 = vsel %vm53, %v619, %v618
    %v621 = vxor.u32 %v620, 2147483648
    %v622 = vmul.f32 %v621, 1.442695
    %v623 = vpow.pop %v622
    %v624 = vadd.f32 %v623, 1.0
    %v625 = vrcp.pop %v624
    %v626 = vmul.f32 1.0, %v625
    %v627 = vmul.f32 %v626, 2.0
    %v628 = vsub.f32 %v627, 1.0
    %v629 = vsel %vm53, %v628, %v626
    %v630 = vmul.f32 %v629, %v536
    %632 = vrot.lane.b32.xlu0 %v629, 64
    %v633 = vpop.permute.xlu0 %632
    %v635 = vmul.f32 %v629, %v633
    %637 = vrot.lane.b32.xlu0 %v635, 32
    %v638 = vpop.permute.xlu0 %637
    %v640 = vadd.f32 %v630, %v638
    %v641 = vtanh.pop %v640
    %643 = vrot.lane.b32.xlu0 %v641, 64
    %v644 = vpop.permute.xlu0 %643
    %v646 = vmul.f32 %v629, %v644
    %648 = vrot.lane.b32.xlu0 %v646, 32
    %v649 = vpop.permute.xlu0 %648
    %v650 = vsel %vm229, %v649, 0
    %652 = vmatprep.subr.mxu0 0.0
    %653 = vmatpush1.msra.mxu0 %v41
    %654 = vmatprep.subr.mxu0 0.0
    %655 = vmatpush1.msra.mxu0 %v42
    %656 = vmatprep.subr.mxu0 0.0
    %657 = vmatpush1.msra.mxu0 %v43
    %658 = vmatprep.subr.mxu0 0.0
    %659 = vmatpush1.msra.mxu0 %v44
    %660 = vmatprep.subr.mxu0 0.0
    %661 = vmatpush1.msra.mxu0 0.0
    %662 = vmatprep.subr.mxu0 0.0
    %663 = vmatpush1.msra.mxu0 0.0
    %664 = vmatprep.subr.mxu0 0.0
    %665 = vmatpush1.msra.mxu0 0.0
    %666 = vmatprep.subr.mxu0 0.0
    %667 = vmatpush1.msra.mxu0 0.0
    %668 = vmatprep.subr.mxu0 0.0
    %669 = vmatpush1.msra.mxu0 0.0
    %670 = vmatprep.subr.mxu0 0.0
    %671 = vmatpush1.msra.mxu0 0.0
    %672 = vmatprep.subr.mxu0 0.0
    %673 = vmatpush1.msra.mxu0 0.0
    %674 = vmatprep.subr.mxu0 0.0
    %675 = vmatpush1.msra.mxu0 0.0
    %676 = vmatprep.subr.mxu0 0.0
    %677 = vmatpush1.msra.mxu0 0.0
    %678 = vmatprep.subr.mxu0 0.0
    %679 = vmatpush1.msra.mxu0 0.0
    %680 = vmatprep.subr.mxu0 0.0
    %681 = vmatpush1.msra.mxu0 0.0
    %682 = vmatprep.subr.mxu0 0.0
    %683 = vmatpush1.msra.mxu0 0.0
    %684 = vmatprep.subr.mxu0 0.0
    %685 = vmatpush1.msra.mxu0 0.0
    %686 = vmatprep.subr.mxu0 0.0
    %687 = vmatpush1.msra.mxu0 0.0
    %688 = vmatprep.subr.mxu0 0.0
    %689 = vmatpush1.msra.mxu0 0.0
    %690 = vmatprep.subr.mxu0 0.0
    %691 = vmatpush1.msra.mxu0 0.0
    %692 = vmatprep.subr.mxu0 0.0
    %693 = vmatpush1.msra.mxu0 0.0
    %694 = vmatprep.subr.mxu0 0.0
    %695 = vmatpush1.msra.mxu0 0.0
    %696 = vmatprep.subr.mxu0 0.0
    %697 = vmatpush1.msra.mxu0 0.0
    %698 = vmatprep.subr.mxu0 0.0
    %699 = vmatpush1.msra.mxu0 0.0
    %700 = vmatprep.subr.mxu0 0.0
    %701 = vmatpush1.msra.mxu0 0.0
    %702 = vmatprep.subr.mxu0 0.0
    %703 = vmatpush1.msra.mxu0 0.0
    %704 = vmatprep.subr.mxu0 0.0
    %705 = vmatpush1.msra.mxu0 0.0
    %706 = vmatprep.subr.mxu0 0.0
    %707 = vmatpush1.msra.mxu0 0.0
    %708 = vmatprep.subr.mxu0 0.0
    %709 = vmatpush1.msra.mxu0 0.0
    %710 = vmatprep.subr.mxu0 0.0
    %711 = vmatpush1.msra.mxu0 0.0
    %712 = vmatprep.subr.mxu0 0.0
    %713 = vmatpush1.msra.mxu0 0.0
    %714 = vmatprep.subr.mxu0 0.0
    %715 = vmatpush1.msra.mxu0 0.0
    %716 = vmatprep.mubr.f32.mxu0 0.0
    %717 = vmatmul.mubr.f32.gmra.mrb[0].mxu0 %v650
    %v718 = vpop.f32.mrb[0].mxu0
    %v719 = vadd.f32 0.0, %v718
    %v720 = vpop.f32.mrb[0].mxu0
    %721 = vdwg.mxu0
    %v722 = vadd.f32 %v191, %v719
    %v723 = vmul.f32 %v722, 2.0
    %v724 = vsel %vm53, %v723, %v722
    %v725 = vxor.u32 %v724, 2147483648
    %v726 = vmul.f32 %v725, 1.442695
    %v727 = vpow.pop %v726
    %v728 = vadd.f32 %v727, 1.0
    %v729 = vrcp.pop %v728
    %v730 = vmul.f32 1.0, %v729
    %v731 = vmul.f32 %v730, 2.0
    %v732 = vsub.f32 %v731, 1.0
    %v733 = vsel %vm53, %v732, %v730
    %v734 = vmul.f32 %v733, %v640
    %736 = vrot.lane.b32.xlu0 %v733, 64
    %v737 = vpop.permute.xlu0 %736
    %v739 = vmul.f32 %v733, %v737
    %741 = vrot.lane.b32.xlu0 %v739, 32
    %v742 = vpop.permute.xlu0 %741
    %v744 = vadd.f32 %v734, %v742
    %v745 = vtanh.pop %v744
    %747 = vrot.lane.b32.xlu0 %v745, 64
    %v748 = vpop.permute.xlu0 %747
    %v750 = vmul.f32 %v733, %v748
    %752 = vrot.lane.b32.xlu0 %v750, 32
    %v753 = vpop.permute.xlu0 %752
    %v754 = vsel %vm229, %v753, 0
    %756 = vmatprep.subr.mxu0 0.0
    %757 = vmatpush1.msra.mxu0 %v41
    %758 = vmatprep.subr.mxu0 0.0
    %759 = vmatpush1.msra.mxu0 %v42
    %760 = vmatprep.subr.mxu0 0.0
    %761 = vmatpush1.msra.mxu0 %v43
    %762 = vmatprep.subr.mxu0 0.0
    %763 = vmatpush1.msra.mxu0 %v44
    %764 = vmatprep.subr.mxu0 0.0
    %765 = vmatpush1.msra.mxu0 0.0
    %766 = vmatprep.subr.mxu0 0.0
    %767 = vmatpush1.msra.mxu0 0.0
    %768 = vmatprep.subr.mxu0 0.0
    %769 = vmatpush1.msra.mxu0 0.0
    %770 = vmatprep.subr.mxu0 0.0
    %771 = vmatpush1.msra.mxu0 0.0
    %772 = vmatprep.subr.mxu0 0.0
    %773 = vmatpush1.msra.mxu0 0.0
    %774 = vmatprep.subr.mxu0 0.0
    %775 = vmatpush1.msra.mxu0 0.0
    %776 = vmatprep.subr.mxu0 0.0
    %777 = vmatpush1.msra.mxu0 0.0
    %778 = vmatprep.subr.mxu0 0.0
    %779 = vmatpush1.msra.mxu0 0.0
    %780 = vmatprep.subr.mxu0 0.0
    %781 = vmatpush1.msra.mxu0 0.0
    %782 = vmatprep.subr.mxu0 0.0
    %783 = vmatpush1.msra.mxu0 0.0
    %784 = vmatprep.subr.mxu0 0.0
    %785 = vmatpush1.msra.mxu0 0.0
    %786 = vmatprep.subr.mxu0 0.0
    %787 = vmatpush1.msra.mxu0 0.0
    %788 = vmatprep.subr.mxu0 0.0
    %789 = vmatpush1.msra.mxu0 0.0
    %790 = vmatprep.subr.mxu0 0.0
    %791 = vmatpush1.msra.mxu0 0.0
    %792 = vmatprep.subr.mxu0 0.0
    %793 = vmatpush1.msra.mxu0 0.0
    %794 = vmatprep.subr.mxu0 0.0
    %795 = vmatpush1.msra.mxu0 0.0
    %796 = vmatprep.subr.mxu0 0.0
    %797 = vmatpush1.msra.mxu0 0.0
    %798 = vmatprep.subr.mxu0 0.0
    %799 = vmatpush1.msra.mxu0 0.0
    %800 = vmatprep.subr.mxu0 0.0
    %801 = vmatpush1.msra.mxu0 0.0
    %802 = vmatprep.subr.mxu0 0.0
    %803 = vmatpush1.msra.mxu0 0.0
    %804 = vmatprep.subr.mxu0 0.0
    %805 = vmatpush1.msra.mxu0 0.0
    %806 = vmatprep.subr.mxu0 0.0
    %807 = vmatpush1.msra.mxu0 0.0
    %808 = vmatprep.subr.mxu0 0.0
    %809 = vmatpush1.msra.mxu0 0.0
    %810 = vmatprep.subr.mxu0 0.0
    %811 = vmatpush1.msra.mxu0 0.0
    %812 = vmatprep.subr.mxu0 0.0
    %813 = vmatpush1.msra.mxu0 0.0
    %814 = vmatprep.subr.mxu0 0.0
    %815 = vmatpush1.msra.mxu0 0.0
    %816 = vmatprep.subr.mxu0 0.0
    %817 = vmatpush1.msra.mxu0 0.0
    %818 = vmatprep.subr.mxu0 0.0
    %819 = vmatpush1.msra.mxu0 0.0
    %820 = vmatprep.mubr.f32.mxu0 0.0
    %821 = vmatmul.mubr.f32.gmra.mrb[0].mxu0 %v754
    %v822 = vpop.f32.mrb[0].mxu0
    %v823 = vadd.f32 0.0, %v822
    %v824 = vpop.f32.mrb[0].mxu0
    %825 = vdwg.mxu0
    %v826 = vadd.f32 %v196, %v823
    %v827 = vmul.f32 %v826, 2.0
    %v828 = vsel %vm53, %v827, %v826
    %v829 = vxor.u32 %v828, 2147483648
    %v830 = vmul.f32 %v829, 1.442695
    %v831 = vpow.pop %v830
    %v832 = vadd.f32 %v831, 1.0
    %v833 = vrcp.pop %v832
    %v834 = vmul.f32 1.0, %v833
    %v835 = vmul.f32 %v834, 2.0
    %v836 = vsub.f32 %v835, 1.0
    %v837 = vsel %vm53, %v836, %v834
    %v838 = vmul.f32 %v837, %v744
    %840 = vrot.lane.b32.xlu0 %v837, 64
    %v841 = vpop.permute.xlu0 %840
    %v843 = vmul.f32 %v837, %v841
    %845 = vrot.lane.b32.xlu0 %v843, 32
    %v846 = vpop.permute.xlu0 %845
    %v848 = vadd.f32 %v838, %v846
    %v849 = vtanh.pop %v848
    %851 = vrot.lane.b32.xlu0 %v849, 64
    %v852 = vpop.permute.xlu0 %851
    %v854 = vmul.f32 %v837, %v852
    %856 = vrot.lane.b32.xlu0 %v854, 32
    %v857 = vpop.permute.xlu0 %856
    %v858 = vsel %vm229, %v857, 0
    %860 = vmatprep.subr.mxu0 0.0
    %861 = vmatpush1.msra.mxu0 %v41
    %862 = vmatprep.subr.mxu0 0.0
    %863 = vmatpush1.msra.mxu0 %v42
    %864 = vmatprep.subr.mxu0 0.0
    %865 = vmatpush1.msra.mxu0 %v43
    %866 = vmatprep.subr.mxu0 0.0
    %867 = vmatpush1.msra.mxu0 %v44
    %868 = vmatprep.subr.mxu0 0.0
    %869 = vmatpush1.msra.mxu0 0.0
    %870 = vmatprep.subr.mxu0 0.0
    %871 = vmatpush1.msra.mxu0 0.0
    %872 = vmatprep.subr.mxu0 0.0
    %873 = vmatpush1.msra.mxu0 0.0
    %874 = vmatprep.subr.mxu0 0.0
    %875 = vmatpush1.msra.mxu0 0.0
    %876 = vmatprep.subr.mxu0 0.0
    %877 = vmatpush1.msra.mxu0 0.0
    %878 = vmatprep.subr.mxu0 0.0
    %879 = vmatpush1.msra.mxu0 0.0
    %880 = vmatprep.subr.mxu0 0.0
    %881 = vmatpush1.msra.mxu0 0.0
    %882 = vmatprep.subr.mxu0 0.0
    %883 = vmatpush1.msra.mxu0 0.0
    %884 = vmatprep.subr.mxu0 0.0
    %885 = vmatpush1.msra.mxu0 0.0
    %886 = vmatprep.subr.mxu0 0.0
    %887 = vmatpush1.msra.mxu0 0.0
    %888 = vmatprep.subr.mxu0 0.0
    %889 = vmatpush1.msra.mxu0 0.0
    %890 = vmatprep.subr.mxu0 0.0
    %891 = vmatpush1.msra.mxu0 0.0
    %892 = vmatprep.subr.mxu0 0.0
    %893 = vmatpush1.msra.mxu0 0.0
    %894 = vmatprep.subr.mxu0 0.0
    %895 = vmatpush1.msra.mxu0 0.0
    %896 = vmatprep.subr.mxu0 0.0
    %897 = vmatpush1.msra.mxu0 0.0
    %898 = vmatprep.subr.mxu0 0.0
    %899 = vmatpush1.msra.mxu0 0.0
    %900 = vmatprep.subr.mxu0 0.0
    %901 = vmatpush1.msra.mxu0 0.0
    %902 = vmatprep.subr.mxu0 0.0
    %903 = vmatpush1.msra.mxu0 0.0
    %904 = vmatprep.subr.mxu0 0.0
    %905 = vmatpush1.msra.mxu0 0.0
    %906 = vmatprep.subr.mxu0 0.0
    %907 = vmatpush1.msra.mxu0 0.0
    %908 = vmatprep.subr.mxu0 0.0
    %909 = vmatpush1.msra.mxu0 0.0
    %910 = vmatprep.subr.mxu0 0.0
    %911 = vmatpush1.msra.mxu0 0.0
    %912 = vmatprep.subr.mxu0 0.0
    %913 = vmatpush1.msra.mxu0 0.0
    %914 = vmatprep.subr.mxu0 0.0
    %915 = vmatpush1.msra.mxu0 0.0
    %916 = vmatprep.subr.mxu0 0.0
    %917 = vmatpush1.msra.mxu0 0.0
    %918 = vmatprep.subr.mxu0 0.0
    %919 = vmatpush1.msra.mxu0 0.0
    %920 = vmatprep.subr.mxu0 0.0
    %921 = vmatpush1.msra.mxu0 0.0
    %922 = vmatprep.subr.mxu0 0.0
    %923 = vmatpush1.msra.mxu0 0.0
    %924 = vmatprep.mubr.f32.mxu0 0.0
    %925 = vmatmul.mubr.f32.gmra.mrb[0].mxu0 %v858
    %v926 = vpop.f32.mrb[0].mxu0
    %v927 = vadd.f32 0.0, %v926
    %v928 = vpop.f32.mrb[0].mxu0
    %929 = vdwg.mxu0
    %v930 = vadd.f32 %v201, %v927
    %v931 = vmul.f32 %v930, 2.0
    %v932 = vsel %vm53, %v931, %v930
    %v933 = vxor.u32 %v932, 2147483648
    %v934 = vmul.f32 %v933, 1.442695
    %v935 = vpow.pop %v934
    %v936 = vadd.f32 %v935, 1.0
    %v937 = vrcp.pop %v936
    %v938 = vmul.f32 1.0, %v937
    %v939 = vmul.f32 %v938, 2.0
    %v940 = vsub.f32 %v939, 1.0
    %v941 = vsel %vm53, %v940, %v938
    %v942 = vmul.f32 %v941, %v848
    %944 = vrot.lane.b32.xlu0 %v941, 64
    %v945 = vpop.permute.xlu0 %944
    %v947 = vmul.f32 %v941, %v945
    %949 = vrot.lane.b32.xlu0 %v947, 32
    %v950 = vpop.permute.xlu0 %949
    %v952 = vadd.f32 %v942, %v950
    %v953 = vtanh.pop %v952
    %955 = vrot.lane.b32.xlu0 %v953, 64
    %v956 = vpop.permute.xlu0 %955
    %v958 = vmul.f32 %v941, %v956
    %v959 = vld [vmem:[%s4] sm:$0xff]
    %v960 = vld [vmem:[%s4 + $0x8] sm:$0xff]
    %v961 = vld [vmem:[%s4 + $0x10] sm:$0xff]
    %v962 = vld [vmem:[%s4 + $0x18] sm:$0xff]
    %v963 = vld [vmem:[%s5] sm:$0x1]
    %v965 = vlaneseq
    %v966 = vshrl.u32 %v965, 7
    %v967 = vsub.s32 0, %v966
    %v968 = vrot.slane %v963, %v967
    %971 = vrot.lane.b32.xlu0 %v958, 32
    %v972 = vpop.permute.xlu0 %971
    %v973 = vsel %vm229, %v972, 0
    %975 = vmatprep.subr.mxu0 0.0
    %976 = vmatpush1.msra.mxu0 %v959
    %977 = vmatprep.subr.mxu0 0.0
    %978 = vmatpush1.msra.mxu0 %v960
    %979 = vmatprep.subr.mxu0 0.0
    %980 = vmatpush1.msra.mxu0 %v961
    %981 = vmatprep.subr.mxu0 0.0
    %982 = vmatpush1.msra.mxu0 %v962
    %983 = vmatprep.subr.mxu0 0.0
    %984 = vmatpush1.msra.mxu0 0.0
    %985 = vmatprep.subr.mxu0 0.0
    %986 = vmatpush1.msra.mxu0 0.0
    %987 = vmatprep.subr.mxu0 0.0
    %988 = vmatpush1.msra.mxu0 0.0
    %989 = vmatprep.subr.mxu0 0.0
    %990 = vmatpush1.msra.mxu0 0.0
    %991 = vmatprep.subr.mxu0 0.0
    %992 = vmatpush1.msra.mxu0 0.0
    %993 = vmatprep.subr.mxu0 0.0
    %994 = vmatpush1.msra.mxu0 0.0
    %995 = vmatprep.subr.mxu0 0.0
    %996 = vmatpush1.msra.mxu0 0.0
    %997 = vmatprep.subr.mxu0 0.0
    %998 = vmatpush1.msra.mxu0 0.0
    %999 = vmatprep.subr.mxu0 0.0
    %1000 = vmatpush1.msra.mxu0 0.0
    %1001 = vmatprep.subr.mxu0 0.0
    %1002 = vmatpush1.msra.mxu0 0.0
    %1003 = vmatprep.subr.mxu0 0.0
    %1004 = vmatpush1.msra.mxu0 0.0
    %1005 = vmatprep.subr.mxu0 0.0
    %1006 = vmatpush1.msra.mxu0 0.0
    %1007 = vmatprep.subr.mxu0 0.0
    %1008 = vmatpush1.msra.mxu0 0.0
    %1009 = vmatprep.subr.mxu0 0.0
    %1010 = vmatpush1.msra.mxu0 0.0
    %1011 = vmatprep.subr.mxu0 0.0
    %1012 = vmatpush1.msra.mxu0 0.0
    %1013 = vmatprep.subr.mxu0 0.0
    %1014 = vmatpush1.msra.mxu0 0.0
    %1015 = vmatprep.subr.mxu0 0.0
    %1016 = vmatpush1.msra.mxu0 0.0
    %1017 = vmatprep.subr.mxu0 0.0
    %1018 = vmatpush1.msra.mxu0 0.0
    %1019 = vmatprep.subr.mxu0 0.0
    %1020 = vmatpush1.msra.mxu0 0.0
    %1021 = vmatprep.subr.mxu0 0.0
    %1022 = vmatpush1.msra.mxu0 0.0
    %1023 = vmatprep.subr.mxu0 0.0
    %1024 = vmatpush1.msra.mxu0 0.0
    %1025 = vmatprep.subr.mxu0 0.0
    %1026 = vmatpush1.msra.mxu0 0.0
    %1027 = vmatprep.subr.mxu0 0.0
    %1028 = vmatpush1.msra.mxu0 0.0
    %1029 = vmatprep.subr.mxu0 0.0
    %1030 = vmatpush1.msra.mxu0 0.0
    %1031 = vmatprep.subr.mxu0 0.0
    %1032 = vmatpush1.msra.mxu0 0.0
    %1033 = vmatprep.subr.mxu0 0.0
    %1034 = vmatpush1.msra.mxu0 0.0
    %1035 = vmatprep.subr.mxu0 0.0
    %1036 = vmatpush1.msra.mxu0 0.0
    %1037 = vmatprep.subr.mxu0 0.0
    %1038 = vmatpush1.msra.mxu0 0.0
    %1039 = vmatprep.mubr.f32.mxu0 0.0
    %1040 = vmatmul.mubr.f32.gmra.mrb[0].mxu0 %v973
    %v1041 = vpop.f32.mrb[0].mxu0
    %v1042 = vadd.f32 %v968, %v1041
    %v1043 = vpop.f32.mrb[0].mxu0
    %1044 = vdwg.mxu0
    %vm1045 = vcmask 130048
    %1046 = vst.msk [vmem:[#allocation2] sm:$0xff] %vm1045, %v1042
    %v1047 = vld [vmem:[%s6] sm:$0xff]
    %v1048 = vld [vmem:[%s6 + $0x8] sm:$0xff]
    %v1049 = vld [vmem:[%s7] sm:$0x1]
    %v1051 = vlaneseq
    %v1052 = vshrl.u32 %v1051, 7
    %v1053 = vsub.s32 0, %v1052
    %v1054 = vrot.slane %v1049, %v1053
    %v1057 = vsel %vm1045, %v1042, 0
    %1059 = vmatprep.subr.mxu0 0.0
    %1060 = vmatpush1.msra.mxu0 %v1047
    %1061 = vmatprep.subr.mxu0 0.0
    %1062 = vmatpush1.msra.mxu0 %v1048
    %1063 = vmatprep.subr.mxu0 0.0
    %1064 = vmatpush1.msra.mxu0 0.0
    %1065 = vmatprep.subr.mxu0 0.0
    %1066 = vmatpush1.msra.mxu0 0.0
    %1067 = vmatprep.subr.mxu0 0.0
    %1068 = vmatpush1.msra.mxu0 0.0
    %1069 = vmatprep.subr.mxu0 0.0
    %1070 = vmatpush1.msra.mxu0 0.0
    %1071 = vmatprep.subr.mxu0 0.0
    %1072 = vmatpush1.msra.mxu0 0.0
    %1073 = vmatprep.subr.mxu0 0.0
    %1074 = vmatpush1.msra.mxu0 0.0
    %1075 = vmatprep.subr.mxu0 0.0
    %1076 = vmatpush1.msra.mxu0 0.0
    %1077 = vmatprep.subr.mxu0 0.0
    %1078 = vmatpush1.msra.mxu0 0.0
    %1079 = vmatprep.subr.mxu0 0.0
    %1080 = vmatpush1.msra.mxu0 0.0
    %1081 = vmatprep.subr.mxu0 0.0
    %1082 = vmatpush1.msra.mxu0 0.0
    %1083 = vmatprep.subr.mxu0 0.0
    %1084 = vmatpush1.msra.mxu0 0.0
    %1085 = vmatprep.subr.mxu0 0.0
    %1086 = vmatpush1.msra.mxu0 0.0
    %1087 = vmatprep.subr.mxu0 0.0
    %1088 = vmatpush1.msra.mxu0 0.0
    %1089 = vmatprep.subr.mxu0 0.0
    %1090 = vmatpush1.msra.mxu0 0.0
    %1091 = vmatprep.subr.mxu0 0.0
    %1092 = vmatpush1.msra.mxu0 0.0
    %1093 = vmatprep.subr.mxu0 0.0
    %1094 = vmatpush1.msra.mxu0 0.0
    %1095 = vmatprep.subr.mxu0 0.0
    %1096 = vmatpush1.msra.mxu0 0.0
    %1097 = vmatprep.subr.mxu0 0.0
    %1098 = vmatpush1.msra.mxu0 0.0
    %1099 = vmatprep.subr.mxu0 0.0
    %1100 = vmatpush1.msra.mxu0 0.0
    %1101 = vmatprep.subr.mxu0 0.0
    %1102 = vmatpush1.msra.mxu0 0.0
    %1103 = vmatprep.subr.mxu0 0.0
    %1104 = vmatpush1.msra.mxu0 0.0
    %1105 = vmatprep.subr.mxu0 0.0
    %1106 = vmatpush1.msra.mxu0 0.0
    %1107 = vmatprep.subr.mxu0 0.0
    %1108 = vmatpush1.msra.mxu0 0.0
    %1109 = vmatprep.subr.mxu0 0.0
    %1110 = vmatpush1.msra.mxu0 0.0
    %1111 = vmatprep.subr.mxu0 0.0
    %1112 = vmatpush1.msra.mxu0 0.0
    %1113 = vmatprep.subr.mxu0 0.0
    %1114 = vmatpush1.msra.mxu0 0.0
    %1115 = vmatprep.subr.mxu0 0.0
    %1116 = vmatpush1.msra.mxu0 0.0
    %1117 = vmatprep.subr.mxu0 0.0
    %1118 = vmatpush1.msra.mxu0 0.0
    %1119 = vmatprep.subr.mxu0 0.0
    %1120 = vmatpush1.msra.mxu0 0.0
    %1121 = vmatprep.subr.mxu0 0.0
    %1122 = vmatpush1.msra.mxu0 0.0
    %1123 = vmatprep.mubr.f32.mxu0 0.0
    %1124 = vmatmul.mubr.f32.gmra.mrb[0].mxu0 %v1057
    %v1125 = vpop.f32.mrb[0].mxu0
    %v1126 = vadd.f32 %v1054, %v1125
    %v1127 = vpop.f32.mrb[0].mxu0
    %1128 = vdwg.mxu0
    %v1129 = vmul.f32 %v1126, 2.0
    %v1130 = vsel %vm53, %v1129, %v1126
    %v1131 = vxor.u32 %v1130, 2147483648
    %v1132 = vmul.f32 %v1131, 1.442695
    %v1133 = vpow.pop %v1132
    %v1134 = vadd.f32 %v1133, 1.0
    %v1135 = vrcp.pop %v1134
    %v1136 = vmul.f32 1.0, %v1135
    %v1137 = vmul.f32 %v1136, 2.0
    %v1138 = vsub.f32 %v1137, 1.0
    %v1139 = vsel %vm53, %v1138, %v1136
    %1141 = vrot.lane.b32.xlu0 %v1139, 64
    %v1142 = vpop.permute.xlu0 %1141
    %v1144 = vmul.f32 %v1139, %v1142
    %v1145 = vtanh.pop %v1144
    %1147 = vrot.lane.b32.xlu0 %v1145, 96
    %v1148 = vpop.permute.xlu0 %1147
    %v1150 = vmul.f32 %v1139, %v1148
    %1152 = vrot.lane.b32.xlu0 %v1150, 32
    %v1153 = vpop.permute.xlu0 %1152
    %v1154 = vsel %vm229, %v1153, 0
    %1156 = vmatprep.subr.mxu0 0.0
    %1157 = vmatpush1.msra.mxu0 %v45
    %1158 = vmatprep.subr.mxu0 0.0
    %1159 = vmatpush1.msra.mxu0 %v46
    %1160 = vmatprep.subr.mxu0 0.0
    %1161 = vmatpush1.msra.mxu0 %v47
    %1162 = vmatprep.subr.mxu0 0.0
    %1163 = vmatpush1.msra.mxu0 %v48
    %1164 = vmatprep.subr.mxu0 0.0
    %1165 = vmatpush1.msra.mxu0 0.0
    %1166 = vmatprep.subr.mxu0 0.0
    %1167 = vmatpush1.msra.mxu0 0.0
    %1168 = vmatprep.subr.mxu0 0.0
    %1169 = vmatpush1.msra.mxu0 0.0
    %1170 = vmatprep.subr.mxu0 0.0
    %1171 = vmatpush1.msra.mxu0 0.0
    %1172 = vmatprep.subr.mxu0 0.0
    %1173 = vmatpush1.msra.mxu0 0.0
    %1174 = vmatprep.subr.mxu0 0.0
    %1175 = vmatpush1.msra.mxu0 0.0
    %1176 = vmatprep.subr.mxu0 0.0
    %1177 = vmatpush1.msra.mxu0 0.0
    %1178 = vmatprep.subr.mxu0 0.0
    %1179 = vmatpush1.msra.mxu0 0.0
    %1180 = vmatprep.subr.mxu0 0.0
    %1181 = vmatpush1.msra.mxu0 0.0
    %1182 = vmatprep.subr.mxu0 0.0
    %1183 = vmatpush1.msra.mxu0 0.0
    %1184 = vmatprep.subr.mxu0 0.0
    %1185 = vmatpush1.msra.mxu0 0.0
    %1186 = vmatprep.subr.mxu0 0.0
    %1187 = vmatpush1.msra.mxu0 0.0
    %1188 = vmatprep.subr.mxu0 0.0
    %1189 = vmatpush1.msra.mxu0 0.0
    %1190 = vmatprep.subr.mxu0 0.0
    %1191 = vmatpush1.msra.mxu0 0.0
    %1192 = vmatprep.subr.mxu0 0.0
    %1193 = vmatpush1.msra.mxu0 0.0
    %1194 = vmatprep.subr.mxu0 0.0
    %1195 = vmatpush1.msra.mxu0 0.0
    %1196 = vmatprep.subr.mxu0 0.0
    %1197 = vmatpush1.msra.mxu0 0.0
    %1198 = vmatprep.subr.mxu0 0.0
    %1199 = vmatpush1.msra.mxu0 0.0
    %1200 = vmatprep.subr.mxu0 0.0
    %1201 = vmatpush1.msra.mxu0 0.0
    %1202 = vmatprep.subr.mxu0 0.0
    %1203 = vmatpush1.msra.mxu0 0.0
    %1204 = vmatprep.subr.mxu0 0.0
    %1205 = vmatpush1.msra.mxu0 0.0
    %1206 = vmatprep.subr.mxu0 0.0
    %1207 = vmatpush1.msra.mxu0 0.0
    %1208 = vmatprep.subr.mxu0 0.0
    %1209 = vmatpush1.msra.mxu0 0.0
    %1210 = vmatprep.subr.mxu0 0.0
    %1211 = vmatpush1.msra.mxu0 0.0
    %1212 = vmatprep.subr.mxu0 0.0
    %1213 = vmatpush1.msra.mxu0 0.0
    %1214 = vmatprep.subr.mxu0 0.0
    %1215 = vmatpush1.msra.mxu0 0.0
    %1216 = vmatprep.subr.mxu0 0.0
    %1217 = vmatpush1.msra.mxu0 0.0
    %1218 = vmatprep.subr.mxu0 0.0
    %1219 = vmatpush1.msra.mxu0 0.0
    %1220 = vmatprep.mubr.f32.mxu0 0.0
    %1221 = vmatmul.mubr.f32.gmra.mrb[0].mxu0 %v1154
    %v1222 = vpop.f32.mrb[0].mxu0
    %v1223 = vadd.f32 0.0, %v1222
    %v1224 = vpop.f32.mrb[0].mxu0
    %1225 = vdwg.mxu0
    %v1226 = vadd.f32 %v1126, %v1223
    %v1227 = vmul.f32 %v1226, 2.0
    %v1228 = vsel %vm53, %v1227, %v1226
    %v1229 = vxor.u32 %v1228, 2147483648
    %v1230 = vmul.f32 %v1229, 1.442695
    %v1231 = vpow.pop %v1230
    %v1232 = vadd.f32 %v1231, 1.0
    %v1233 = vrcp.pop %v1232
    %v1234 = vmul.f32 1.0, %v1233
    %v1235 = vmul.f32 %v1234, 2.0
    %v1236 = vsub.f32 %v1235, 1.0
    %v1237 = vsel %vm53, %v1236, %v1234
    %1239 = vrot.lane.b32.xlu0 %v1144, 32
    %v1240 = vpop.permute.xlu0 %1239
    %v1242 = vmul.f32 %v1237, %v1240
    %1244 = vrot.lane.b32.xlu0 %v1237, 64
    %v1245 = vpop.permute.xlu0 %1244
    %v1247 = vmul.f32 %v1237, %v1245
    %1249 = vrot.lane.b32.xlu0 %v1247, 32
    %v1250 = vpop.permute.xlu0 %1249
    %v1252 = vadd.f32 %v1242, %v1250
    %v1253 = vtanh.pop %v1252
    %1255 = vrot.lane.b32.xlu0 %v1253, 64
    %v1256 = vpop.permute.xlu0 %1255
    %v1258 = vmul.f32 %v1237, %v1256
    %1260 = vrot.lane.b32.xlu0 %v1258, 32
    %v1261 = vpop.permute.xlu0 %1260
    %v1262 = vsel %vm229, %v1261, 0
    %1264 = vmatprep.subr.mxu0 0.0
    %1265 = vmatpush1.msra.mxu0 %v45
    %1266 = vmatprep.subr.mxu0 0.0
    %1267 = vmatpush1.msra.mxu0 %v46
    %1268 = vmatprep.subr.mxu0 0.0
    %1269 = vmatpush1.msra.mxu0 %v47
    %1270 = vmatprep.subr.mxu0 0.0
    %1271 = vmatpush1.msra.mxu0 %v48
    %1272 = vmatprep.subr.mxu0 0.0
    %1273 = vmatpush1.msra.mxu0 0.0
    %1274 = vmatprep.subr.mxu0 0.0
    %1275 = vmatpush1.msra.mxu0 0.0
    %1276 = vmatprep.subr.mxu0 0.0
    %1277 = vmatpush1.msra.mxu0 0.0
    %1278 = vmatprep.subr.mxu0 0.0
    %1279 = vmatpush1.msra.mxu0 0.0
    %1280 = vmatprep.subr.mxu0 0.0
    %1281 = vmatpush1.msra.mxu0 0.0
    %1282 = vmatprep.subr.mxu0 0.0
    %1283 = vmatpush1.msra.mxu0 0.0
    %1284 = vmatprep.subr.mxu0 0.0
    %1285 = vmatpush1.msra.mxu0 0.0
    %1286 = vmatprep.subr.mxu0 0.0
    %1287 = vmatpush1.msra.mxu0 0.0
    %1288 = vmatprep.subr.mxu0 0.0
    %1289 = vmatpush1.msra.mxu0 0.0
    %1290 = vmatprep.subr.mxu0 0.0
    %1291 = vmatpush1.msra.mxu0 0.0
    %1292 = vmatprep.subr.mxu0 0.0
    %1293 = vmatpush1.msra.mxu0 0.0
    %1294 = vmatprep.subr.mxu0 0.0
    %1295 = vmatpush1.msra.mxu0 0.0
    %1296 = vmatprep.subr.mxu0 0.0
    %1297 = vmatpush1.msra.mxu0 0.0
    %1298 = vmatprep.subr.mxu0 0.0
    %1299 = vmatpush1.msra.mxu0 0.0
    %1300 = vmatprep.subr.mxu0 0.0
    %1301 = vmatpush1.msra.mxu0 0.0
    %1302 = vmatprep.subr.mxu0 0.0
    %1303 = vmatpush1.msra.mxu0 0.0
    %1304 = vmatprep.subr.mxu0 0.0
    %1305 = vmatpush1.msra.mxu0 0.0
    %1306 = vmatprep.subr.mxu0 0.0
    %1307 = vmatpush1.msra.mxu0 0.0
    %1308 = vmatprep.subr.mxu0 0.0
    %1309 = vmatpush1.msra.mxu0 0.0
    %1310 = vmatprep.subr.mxu0 0.0
    %1311 = vmatpush1.msra.mxu0 0.0
    %1312 = vmatprep.subr.mxu0 0.0
    %1313 = vmatpush1.msra.mxu0 0.0
    %1314 = vmatprep.subr.mxu0 0.0
    %1315 = vmatpush1.msra.mxu0 0.0
    %1316 = vmatprep.subr.mxu0 0.0
    %1317 = vmatpush1.msra.mxu0 0.0
    %1318 = vmatprep.subr.mxu0 0.0
    %1319 = vmatpush1.msra.mxu0 0.0
    %1320 = vmatprep.subr.mxu0 0.0
    %1321 = vmatpush1.msra.mxu0 0.0
    %1322 = vmatprep.subr.mxu0 0.0
    %1323 = vmatpush1.msra.mxu0 0.0
    %1324 = vmatprep.subr.mxu0 0.0
    %1325 = vmatpush1.msra.mxu0 0.0
    %1326 = vmatprep.subr.mxu0 0.0
    %1327 = vmatpush1.msra.mxu0 0.0
    %1328 = vmatprep.mubr.f32.mxu0 0.0
    %1329 = vmatmul.mubr.f32.gmra.mrb[0].mxu0 %v1262
    %v1330 = vpop.f32.mrb[0].mxu0
    %v1331 = vadd.f32 0.0, %v1330
    %v1332 = vpop.f32.mrb[0].mxu0
    %1333 = vdwg.mxu0
    %v1334 = vadd.f32 %v1126, %v1331
    %v1335 = vmul.f32 %v1334, 2.0
    %v1336 = vsel %vm53, %v1335, %v1334
    %v1337 = vxor.u32 %v1336, 2147483648
    %v1338 = vmul.f32 %v1337, 1.442695
    %v1339 = vpow.pop %v1338
    %v1340 = vadd.f32 %v1339, 1.0
    %v1341 = vrcp.pop %v1340
    %v1342 = vmul.f32 1.0, %v1341
    %v1343 = vmul.f32 %v1342, 2.0
    %v1344 = vsub.f32 %v1343, 1.0
    %v1345 = vsel %vm53, %v1344, %v1342
    %v1346 = vmul.f32 %v1345, %v1252
    %1348 = vrot.lane.b32.xlu0 %v1345, 64
    %v1349 = vpop.permute.xlu0 %1348
    %v1351 = vmul.f32 %v1345, %v1349
    %1353 = vrot.lane.b32.xlu0 %v1351, 32
    %v1354 = vpop.permute.xlu0 %1353
    %v1356 = vadd.f32 %v1346, %v1354
    %v1357 = vtanh.pop %v1356
    %1359 = vrot.lane.b32.xlu0 %v1357, 64
    %v1360 = vpop.permute.xlu0 %1359
    %v1362 = vmul.f32 %v1345, %v1360
    %1364 = vrot.lane.b32.xlu0 %v1362, 32
    %v1365 = vpop.permute.xlu0 %1364
    %v1366 = vsel %vm229, %v1365, 0
    %1368 = vmatprep.subr.mxu0 0.0
    %1369 = vmatpush1.msra.mxu0 %v45
    %1370 = vmatprep.subr.mxu0 0.0
    %1371 = vmatpush1.msra.mxu0 %v46
    %1372 = vmatprep.subr.mxu0 0.0
    %1373 = vmatpush1.msra.mxu0 %v47
    %1374 = vmatprep.subr.mxu0 0.0
    %1375 = vmatpush1.msra.mxu0 %v48
    %1376 = vmatprep.subr.mxu0 0.0
    %1377 = vmatpush1.msra.mxu0 0.0
    %1378 = vmatprep.subr.mxu0 0.0
    %1379 = vmatpush1.msra.mxu0 0.0
    %1380 = vmatprep.subr.mxu0 0.0
    %1381 = vmatpush1.msra.mxu0 0.0
    %1382 = vmatprep.subr.mxu0 0.0
    %1383 = vmatpush1.msra.mxu0 0.0
    %1384 = vmatprep.subr.mxu0 0.0
    %1385 = vmatpush1.msra.mxu0 0.0
    %1386 = vmatprep.subr.mxu0 0.0
    %1387 = vmatpush1.msra.mxu0 0.0
    %1388 = vmatprep.subr.mxu0 0.0
    %1389 = vmatpush1.msra.mxu0 0.0
    %1390 = vmatprep.subr.mxu0 0.0
    %1391 = vmatpush1.msra.mxu0 0.0
    %1392 = vmatprep.subr.mxu0 0.0
    %1393 = vmatpush1.msra.mxu0 0.0
    %1394 = vmatprep.subr.mxu0 0.0
    %1395 = vmatpush1.msra.mxu0 0.0
    %1396 = vmatprep.subr.mxu0 0.0
    %1397 = vmatpush1.msra.mxu0 0.0
    %1398 = vmatprep.subr.mxu0 0.0
    %1399 = vmatpush1.msra.mxu0 0.0
    %1400 = vmatprep.subr.mxu0 0.0
    %1401 = vmatpush1.msra.mxu0 0.0
    %1402 = vmatprep.subr.mxu0 0.0
    %1403 = vmatpush1.msra.mxu0 0.0
    %1404 = vmatprep.subr.mxu0 0.0
    %1405 = vmatpush1.msra.mxu0 0.0
    %1406 = vmatprep.subr.mxu0 0.0
    %1407 = vmatpush1.msra.mxu0 0.0
    %1408 = vmatprep.subr.mxu0 0.0
    %1409 = vmatpush1.msra.mxu0 0.0
    %1410 = vmatprep.subr.mxu0 0.0
    %1411 = vmatpush1.msra.mxu0 0.0
    %1412 = vmatprep.subr.mxu0 0.0
    %1413 = vmatpush1.msra.mxu0 0.0
    %1414 = vmatprep.subr.mxu0 0.0
    %1415 = vmatpush1.msra.mxu0 0.0
    %1416 = vmatprep.subr.mxu0 0.0
    %1417 = vmatpush1.msra.mxu0 0.0
    %1418 = vmatprep.subr.mxu0 0.0
    %1419 = vmatpush1.msra.mxu0 0.0
    %1420 = vmatprep.subr.mxu0 0.0
    %1421 = vmatpush1.msra.mxu0 0.0
    %1422 = vmatprep.subr.mxu0 0.0
    %1423 = vmatpush1.msra.mxu0 0.0
    %1424 = vmatprep.subr.mxu0 0.0
    %1425 = vmatpush1.msra.mxu0 0.0
    %1426 = vmatprep.subr.mxu0 0.0
    %1427 = vmatpush1.msra.mxu0 0.0
    %1428 = vmatprep.subr.mxu0 0.0
    %1429 = vmatpush1.msra.mxu0 0.0
    %1430 = vmatprep.subr.mxu0 0.0
    %1431 = vmatpush1.msra.mxu0 0.0
    %1432 = vmatprep.mubr.f32.mxu0 0.0
    %1433 = vmatmul.mubr.f32.gmra.mrb[0].mxu0 %v1366
    %v1434 = vpop.f32.mrb[0].mxu0
    %v1435 = vadd.f32 0.0, %v1434
    %v1436 = vpop.f32.mrb[0].mxu0
    %1437 = vdwg.mxu0
    %v1438 = vadd.f32 %v1126, %v1435
    %v1439 = vmul.f32 %v1438, 2.0
    %v1440 = vsel %vm53, %v1439, %v1438
    %v1441 = vxor.u32 %v1440, 2147483648
    %v1442 = vmul.f32 %v1441, 1.442695
    %v1443 = vpow.pop %v1442
    %v1444 = vadd.f32 %v1443, 1.0
    %v1445 = vrcp.pop %v1444
    %v1446 = vmul.f32 1.0, %v1445
    %v1447 = vmul.f32 %v1446, 2.0
    %v1448 = vsub.f32 %v1447, 1.0
    %v1449 = vsel %vm53, %v1448, %v1446
    %v1450 = vmul.f32 %v1449, %v1356
    %1452 = vrot.lane.b32.xlu0 %v1449, 64
    %v1453 = vpop.permute.xlu0 %1452
    %v1455 = vmul.f32 %v1449, %v1453
    %1457 = vrot.lane.b32.xlu0 %v1455, 32
    %v1458 = vpop.permute.xlu0 %1457
    %v1460 = vadd.f32 %v1450, %v1458
    %v1461 = vtanh.pop %v1460
    %1463 = vrot.lane.b32.xlu0 %v1461, 64
    %v1464 = vpop.permute.xlu0 %1463
    %v1466 = vmul.f32 %v1449, %v1464
    %1468 = vrot.lane.b32.xlu0 %v1466, 32
    %v1469 = vpop.permute.xlu0 %1468
    %v1470 = vsel %vm229, %v1469, 0
    %1472 = vmatprep.subr.mxu0 0.0
    %1473 = vmatpush1.msra.mxu0 %v45
    %1474 = vmatprep.subr.mxu0 0.0
    %1475 = vmatpush1.msra.mxu0 %v46
    %1476 = vmatprep.subr.mxu0 0.0
    %1477 = vmatpush1.msra.mxu0 %v47
    %1478 = vmatprep.subr.mxu0 0.0
    %1479 = vmatpush1.msra.mxu0 %v48
    %1480 = vmatprep.subr.mxu0 0.0
    %1481 = vmatpush1.msra.mxu0 0.0
    %1482 = vmatprep.subr.mxu0 0.0
    %1483 = vmatpush1.msra.mxu0 0.0
    %1484 = vmatprep.subr.mxu0 0.0
    %1485 = vmatpush1.msra.mxu0 0.0
    %1486 = vmatprep.subr.mxu0 0.0
    %1487 = vmatpush1.msra.mxu0 0.0
    %1488 = vmatprep.subr.mxu0 0.0
    %1489 = vmatpush1.msra.mxu0 0.0
    %1490 = vmatprep.subr.mxu0 0.0
    %1491 = vmatpush1.msra.mxu0 0.0
    %1492 = vmatprep.subr.mxu0 0.0
    %1493 = vmatpush1.msra.mxu0 0.0
    %1494 = vmatprep.subr.mxu0 0.0
    %1495 = vmatpush1.msra.mxu0 0.0
    %1496 = vmatprep.subr.mxu0 0.0
    %1497 = vmatpush1.msra.mxu0 0.0
    %1498 = vmatprep.subr.mxu0 0.0
    %1499 = vmatpush1.msra.mxu0 0.0
    %1500 = vmatprep.subr.mxu0 0.0
    %1501 = vmatpush1.msra.mxu0 0.0
    %1502 = vmatprep.subr.mxu0 0.0
    %1503 = vmatpush1.msra.mxu0 0.0
    %1504 = vmatprep.subr.mxu0 0.0
    %1505 = vmatpush1.msra.mxu0 0.0
    %1506 = vmatprep.subr.mxu0 0.0
    %1507 = vmatpush1.msra.mxu0 0.0
    %1508 = vmatprep.subr.mxu0 0.0
    %1509 = vmatpush1.msra.mxu0 0.0
    %1510 = vmatprep.subr.mxu0 0.0
    %1511 = vmatpush1.msra.mxu0 0.0
    %1512 = vmatprep.subr.mxu0 0.0
    %1513 = vmatpush1.msra.mxu0 0.0
    %1514 = vmatprep.subr.mxu0 0.0
    %1515 = vmatpush1.msra.mxu0 0.0
    %1516 = vmatprep.subr.mxu0 0.0
    %1517 = vmatpush1.msra.mxu0 0.0
    %1518 = vmatprep.subr.mxu0 0.0
    %1519 = vmatpush1.msra.mxu0 0.0
    %1520 = vmatprep.subr.mxu0 0.0
    %1521 = vmatpush1.msra.mxu0 0.0
    %1522 = vmatprep.subr.mxu0 0.0
    %1523 = vmatpush1.msra.mxu0 0.0
    %1524 = vmatprep.subr.mxu0 0.0
    %1525 = vmatpush1.msra.mxu0 0.0
    %1526 = vmatprep.subr.mxu0 0.0
    %1527 = vmatpush1.msra.mxu0 0.0
    %1528 = vmatprep.subr.mxu0 0.0
    %1529 = vmatpush1.msra.mxu0 0.0
    %1530 = vmatprep.subr.mxu0 0.0
    %1531 = vmatpush1.msra.mxu0 0.0
    %1532 = vmatprep.subr.mxu0 0.0
    %1533 = vmatpush1.msra.mxu0 0.0
    %1534 = vmatprep.subr.mxu0 0.0
    %1535 = vmatpush1.msra.mxu0 0.0
    %1536 = vmatprep.mubr.f32.mxu0 0.0
    %1537 = vmatmul.mubr.f32.gmra.mrb[0].mxu0 %v1470
    %v1538 = vpop.f32.mrb[0].mxu0
    %v1539 = vadd.f32 0.0, %v1538
    %v1540 = vpop.f32.mrb[0].mxu0
    %1541 = vdwg.mxu0
    %v1542 = vadd.f32 %v1126, %v1539
    %v1543 = vmul.f32 %v1542, 2.0
    %v1544 = vsel %vm53, %v1543, %v1542
    %v1545 = vxor.u32 %v1544, 2147483648
    %v1546 = vmul.f32 %v1545, 1.442695
    %v1547 = vpow.pop %v1546
    %v1548 = vadd.f32 %v1547, 1.0
    %v1549 = vrcp.pop %v1548
    %v1550 = vmul.f32 1.0, %v1549
    %v1551 = vmul.f32 %v1550, 2.0
    %v1552 = vsub.f32 %v1551, 1.0
    %v1553 = vsel %vm53, %v1552, %v1550
    %v1554 = vmul.f32 %v1553, %v1460
    %1556 = vrot.lane.b32.xlu0 %v1553, 64
    %v1557 = vpop.permute.xlu0 %1556
    %v1559 = vmul.f32 %v1553, %v1557
    %1561 = vrot.lane.b32.xlu0 %v1559, 32
    %v1562 = vpop.permute.xlu0 %1561
    %v1564 = vadd.f32 %v1554, %v1562
    %v1565 = vtanh.pop %v1564
    %1567 = vrot.lane.b32.xlu0 %v1565, 64
    %v1568 = vpop.permute.xlu0 %1567
    %v1570 = vmul.f32 %v1553, %v1568
    %1572 = vrot.lane.b32.xlu0 %v1570, 32
    %v1573 = vpop.permute.xlu0 %1572
    %v1574 = vsel %vm229, %v1573, 0
    %1576 = vmatprep.subr.mxu0 0.0
    %1577 = vmatpush1.msra.mxu0 %v45
    %1578 = vmatprep.subr.mxu0 0.0
    %1579 = vmatpush1.msra.mxu0 %v46
    %1580 = vmatprep.subr.mxu0 0.0
    %1581 = vmatpush1.msra.mxu0 %v47
    %1582 = vmatprep.subr.mxu0 0.0
    %1583 = vmatpush1.msra.mxu0 %v48
    %1584 = vmatprep.subr.mxu0 0.0
    %1585 = vmatpush1.msra.mxu0 0.0
    %1586 = vmatprep.subr.mxu0 0.0
    %1587 = vmatpush1.msra.mxu0 0.0
    %1588 = vmatprep.subr.mxu0 0.0
    %1589 = vmatpush1.msra.mxu0 0.0
    %1590 = vmatprep.subr.mxu0 0.0
    %1591 = vmatpush1.msra.mxu0 0.0
    %1592 = vmatprep.subr.mxu0 0.0
    %1593 = vmatpush1.msra.mxu0 0.0
    %1594 = vmatprep.subr.mxu0 0.0
    %1595 = vmatpush1.msra.mxu0 0.0
    %1596 = vmatprep.subr.mxu0 0.0
    %1597 = vmatpush1.msra.mxu0 0.0
    %1598 = vmatprep.subr.mxu0 0.0
    %1599 = vmatpush1.msra.mxu0 0.0
    %1600 = vmatprep.subr.mxu0 0.0
    %1601 = vmatpush1.msra.mxu0 0.0
    %1602 = vmatprep.subr.mxu0 0.0
    %1603 = vmatpush1.msra.mxu0 0.0
    %1604 = vmatprep.subr.mxu0 0.0
    %1605 = vmatpush1.msra.mxu0 0.0
    %1606 = vmatprep.subr.mxu0 0.0
    %1607 = vmatpush1.msra.mxu0 0.0
    %1608 = vmatprep.subr.mxu0 0.0
    %1609 = vmatpush1.msra.mxu0 0.0
    %1610 = vmatprep.subr.mxu0 0.0
    %1611 = vmatpush1.msra.mxu0 0.0
    %1612 = vmatprep.subr.mxu0 0.0
    %1613 = vmatpush1.msra.mxu0 0.0
    %1614 = vmatprep.subr.mxu0 0.0
    %1615 = vmatpush1.msra.mxu0 0.0
    %1616 = vmatprep.subr.mxu0 0.0
    %1617 = vmatpush1.msra.mxu0 0.0
    %1618 = vmatprep.subr.mxu0 0.0
    %1619 = vmatpush1.msra.mxu0 0.0
    %1620 = vmatprep.subr.mxu0 0.0
    %1621 = vmatpush1.msra.mxu0 0.0
    %1622 = vmatprep.subr.mxu0 0.0
    %1623 = vmatpush1.msra.mxu0 0.0
    %1624 = vmatprep.subr.mxu0 0.0
    %1625 = vmatpush1.msra.mxu0 0.0
    %1626 = vmatprep.subr.mxu0 0.0
    %1627 = vmatpush1.msra.mxu0 0.0
    %1628 = vmatprep.subr.mxu0 0.0
    %1629 = vmatpush1.msra.mxu0 0.0
    %1630 = vmatprep.subr.mxu0 0.0
    %1631 = vmatpush1.msra.mxu0 0.0
    %1632 = vmatprep.subr.mxu0 0.0
    %1633 = vmatpush1.msra.mxu0 0.0
    %1634 = vmatprep.subr.mxu0 0.0
    %1635 = vmatpush1.msra.mxu0 0.0
    %1636 = vmatprep.subr.mxu0 0.0
    %1637 = vmatpush1.msra.mxu0 0.0
    %1638 = vmatprep.subr.mxu0 0.0
    %1639 = vmatpush1.msra.mxu0 0.0
    %1640 = vmatprep.mubr.f32.mxu0 0.0
    %1641 = vmatmul.mubr.f32.gmra.mrb[0].mxu0 %v1574
    %v1642 = vpop.f32.mrb[0].mxu0
    %v1643 = vadd.f32 0.0, %v1642
    %v1644 = vpop.f32.mrb[0].mxu0
    %1645 = vdwg.mxu0
    %v1646 = vadd.f32 %v1126, %v1643
    %v1647 = vmul.f32 %v1646, 2.0
    %v1648 = vsel %vm53, %v1647, %v1646
    %v1649 = vxor.u32 %v1648, 2147483648
    %v1650 = vmul.f32 %v1649, 1.442695
    %v1651 = vpow.pop %v1650
    %v1652 = vadd.f32 %v1651, 1.0
    %v1653 = vrcp.pop %v1652
    %v1654 = vmul.f32 1.0, %v1653
    %v1655 = vmul.f32 %v1654, 2.0
    %v1656 = vsub.f32 %v1655, 1.0
    %v1657 = vsel %vm53, %v1656, %v1654
    %v1658 = vmul.f32 %v1657, %v1564
    %1660 = vrot.lane.b32.xlu0 %v1657, 64
    %v1661 = vpop.permute.xlu0 %1660
    %v1663 = vmul.f32 %v1657, %v1661
    %1665 = vrot.lane.b32.xlu0 %v1663, 32
    %v1666 = vpop.permute.xlu0 %1665
    %v1668 = vadd.f32 %v1658, %v1666
    %v1669 = vtanh.pop %v1668
    %1671 = vrot.lane.b32.xlu0 %v1669, 64
    %v1672 = vpop.permute.xlu0 %1671
    %v1674 = vmul.f32 %v1657, %v1672
    %1676 = vrot.lane.b32.xlu0 %v1674, 32
    %v1677 = vpop.permute.xlu0 %1676
    %v1678 = vsel %vm229, %v1677, 0
    %1680 = vmatprep.subr.mxu0 0.0
    %1681 = vmatpush1.msra.mxu0 %v45
    %1682 = vmatprep.subr.mxu0 0.0
    %1683 = vmatpush1.msra.mxu0 %v46
    %1684 = vmatprep.subr.mxu0 0.0
    %1685 = vmatpush1.msra.mxu0 %v47
    %1686 = vmatprep.subr.mxu0 0.0
    %1687 = vmatpush1.msra.mxu0 %v48
    %1688 = vmatprep.subr.mxu0 0.0
    %1689 = vmatpush1.msra.mxu0 0.0
    %1690 = vmatprep.subr.mxu0 0.0
    %1691 = vmatpush1.msra.mxu0 0.0
    %1692 = vmatprep.subr.mxu0 0.0
    %1693 = vmatpush1.msra.mxu0 0.0
    %1694 = vmatprep.subr.mxu0 0.0
    %1695 = vmatpush1.msra.mxu0 0.0
    %1696 = vmatprep.subr.mxu0 0.0
    %1697 = vmatpush1.msra.mxu0 0.0
    %1698 = vmatprep.subr.mxu0 0.0
    %1699 = vmatpush1.msra.mxu0 0.0
    %1700 = vmatprep.subr.mxu0 0.0
    %1701 = vmatpush1.msra.mxu0 0.0
    %1702 = vmatprep.subr.mxu0 0.0
    %1703 = vmatpush1.msra.mxu0 0.0
    %1704 = vmatprep.subr.mxu0 0.0
    %1705 = vmatpush1.msra.mxu0 0.0
    %1706 = vmatprep.subr.mxu0 0.0
    %1707 = vmatpush1.msra.mxu0 0.0
    %1708 = vmatprep.subr.mxu0 0.0
    %1709 = vmatpush1.msra.mxu0 0.0
    %1710 = vmatprep.subr.mxu0 0.0
    %1711 = vmatpush1.msra.mxu0 0.0
    %1712 = vmatprep.subr.mxu0 0.0
    %1713 = vmatpush1.msra.mxu0 0.0
    %1714 = vmatprep.subr.mxu0 0.0
    %1715 = vmatpush1.msra.mxu0 0.0
    %1716 = vmatprep.subr.mxu0 0.0
    %1717 = vmatpush1.msra.mxu0 0.0
    %1718 = vmatprep.subr.mxu0 0.0
    %1719 = vmatpush1.msra.mxu0 0.0
    %1720 = vmatprep.subr.mxu0 0.0
    %1721 = vmatpush1.msra.mxu0 0.0
    %1722 = vmatprep.subr.mxu0 0.0
    %1723 = vmatpush1.msra.mxu0 0.0
    %1724 = vmatprep.subr.mxu0 0.0
    %1725 = vmatpush1.msra.mxu0 0.0
    %1726 = vmatprep.subr.mxu0 0.0
    %1727 = vmatpush1.msra.mxu0 0.0
    %1728 = vmatprep.subr.mxu0 0.0
    %1729 = vmatpush1.msra.mxu0 0.0
    %1730 = vmatprep.subr.mxu0 0.0
    %1731 = vmatpush1.msra.mxu0 0.0
    %1732 = vmatprep.subr.mxu0 0.0
    %1733 = vmatpush1.msra.mxu0 0.0
    %1734 = vmatprep.subr.mxu0 0.0
    %1735 = vmatpush1.msra.mxu0 0.0
    %1736 = vmatprep.subr.mxu0 0.0
    %1737 = vmatpush1.msra.mxu0 0.0
    %1738 = vmatprep.subr.mxu0 0.0
    %1739 = vmatpush1.msra.mxu0 0.0
    %1740 = vmatprep.subr.mxu0 0.0
    %1741 = vmatpush1.msra.mxu0 0.0
    %1742 = vmatprep.subr.mxu0 0.0
    %1743 = vmatpush1.msra.mxu0 0.0
    %1744 = vmatprep.mubr.f32.mxu0 0.0
    %1745 = vmatmul.mubr.f32.gmra.mrb[0].mxu0 %v1678
    %v1746 = vpop.f32.mrb[0].mxu0
    %v1747 = vadd.f32 0.0, %v1746
    %v1748 = vpop.f32.mrb[0].mxu0
    %1749 = vdwg.mxu0
    %v1750 = vadd.f32 %v1126, %v1747
    %v1751 = vmul.f32 %v1750, 2.0
    %v1752 = vsel %vm53, %v1751, %v1750
    %v1753 = vxor.u32 %v1752, 2147483648
    %v1754 = vmul.f32 %v1753, 1.442695
    %v1755 = vpow.pop %v1754
    %v1756 = vadd.f32 %v1755, 1.0
    %v1757 = vrcp.pop %v1756
    %v1758 = vmul.f32 1.0, %v1757
    %v1759 = vmul.f32 %v1758, 2.0
    %v1760 = vsub.f32 %v1759, 1.0
    %v1761 = vsel %vm53, %v1760, %v1758
    %v1762 = vmul.f32 %v1761, %v1668
    %1764 = vrot.lane.b32.xlu0 %v1761, 64
    %v1765 = vpop.permute.xlu0 %1764
    %v1767 = vmul.f32 %v1761, %v1765
    %1769 = vrot.lane.b32.xlu0 %v1767, 32
    %v1770 = vpop.permute.xlu0 %1769
    %v1772 = vadd.f32 %v1762, %v1770
    %v1773 = vtanh.pop %v1772
    %1775 = vrot.lane.b32.xlu0 %v1773, 64
    %v1776 = vpop.permute.xlu0 %1775
    %v1778 = vmul.f32 %v1761, %v1776
    %1780 = vrot.lane.b32.xlu0 %v1778, 32
    %v1781 = vpop.permute.xlu0 %1780
    %v1782 = vsel %vm229, %v1781, 0
    %1784 = vmatprep.subr.mxu0 0.0
    %1785 = vmatpush1.msra.mxu0 %v45
    %1786 = vmatprep.subr.mxu0 0.0
    %1787 = vmatpush1.msra.mxu0 %v46
    %1788 = vmatprep.subr.mxu0 0.0
    %1789 = vmatpush1.msra.mxu0 %v47
    %1790 = vmatprep.subr.mxu0 0.0
    %1791 = vmatpush1.msra.mxu0 %v48
    %1792 = vmatprep.subr.mxu0 0.0
    %1793 = vmatpush1.msra.mxu0 0.0
    %1794 = vmatprep.subr.mxu0 0.0
    %1795 = vmatpush1.msra.mxu0 0.0
    %1796 = vmatprep.subr.mxu0 0.0
    %1797 = vmatpush1.msra.mxu0 0.0
    %1798 = vmatprep.subr.mxu0 0.0
    %1799 = vmatpush1.msra.mxu0 0.0
    %1800 = vmatprep.subr.mxu0 0.0
    %1801 = vmatpush1.msra.mxu0 0.0
    %1802 = vmatprep.subr.mxu0 0.0
    %1803 = vmatpush1.msra.mxu0 0.0
    %1804 = vmatprep.subr.mxu0 0.0
    %1805 = vmatpush1.msra.mxu0 0.0
    %1806 = vmatprep.subr.mxu0 0.0
    %1807 = vmatpush1.msra.mxu0 0.0
    %1808 = vmatprep.subr.mxu0 0.0
    %1809 = vmatpush1.msra.mxu0 0.0
    %1810 = vmatprep.subr.mxu0 0.0
    %1811 = vmatpush1.msra.mxu0 0.0
    %1812 = vmatprep.subr.mxu0 0.0
    %1813 = vmatpush1.msra.mxu0 0.0
    %1814 = vmatprep.subr.mxu0 0.0
    %1815 = vmatpush1.msra.mxu0 0.0
    %1816 = vmatprep.subr.mxu0 0.0
    %1817 = vmatpush1.msra.mxu0 0.0
    %1818 = vmatprep.subr.mxu0 0.0
    %1819 = vmatpush1.msra.mxu0 0.0
    %1820 = vmatprep.subr.mxu0 0.0
    %1821 = vmatpush1.msra.mxu0 0.0
    %1822 = vmatprep.subr.mxu0 0.0
    %1823 = vmatpush1.msra.mxu0 0.0
    %1824 = vmatprep.subr.mxu0 0.0
    %1825 = vmatpush1.msra.mxu0 0.0
    %1826 = vmatprep.subr.mxu0 0.0
    %1827 = vmatpush1.msra.mxu0 0.0
    %1828 = vmatprep.subr.mxu0 0.0
    %1829 = vmatpush1.msra.mxu0 0.0
    %1830 = vmatprep.subr.mxu0 0.0
    %1831 = vmatpush1.msra.mxu0 0.0
    %1832 = vmatprep.subr.mxu0 0.0
    %1833 = vmatpush1.msra.mxu0 0.0
    %1834 = vmatprep.subr.mxu0 0.0
    %1835 = vmatpush1.msra.mxu0 0.0
    %1836 = vmatprep.subr.mxu0 0.0
    %1837 = vmatpush1.msra.mxu0 0.0
    %1838 = vmatprep.subr.mxu0 0.0
    %1839 = vmatpush1.msra.mxu0 0.0
    %1840 = vmatprep.subr.mxu0 0.0
    %1841 = vmatpush1.msra.mxu0 0.0
    %1842 = vmatprep.subr.mxu0 0.0
    %1843 = vmatpush1.msra.mxu0 0.0
    %1844 = vmatprep.subr.mxu0 0.0
    %1845 = vmatpush1.msra.mxu0 0.0
    %1846 = vmatprep.subr.mxu0 0.0
    %1847 = vmatpush1.msra.mxu0 0.0
    %1848 = vmatprep.mubr.f32.mxu0 0.0
    %1849 = vmatmul.mubr.f32.gmra.mrb[0].mxu0 %v1782
    %v1850 = vpop.f32.mrb[0].mxu0
    %v1851 = vadd.f32 0.0, %v1850
    %v1852 = vpop.f32.mrb[0].mxu0
    %1853 = vdwg.mxu0
    %v1854 = vadd.f32 %v1126, %v1851
    %v1855 = vmul.f32 %v1854, 2.0
    %v1856 = vsel %vm53, %v1855, %v1854
    %v1857 = vxor.u32 %v1856, 2147483648
    %v1858 = vmul.f32 %v1857, 1.442695
    %v1859 = vpow.pop %v1858
    %v1860 = vadd.f32 %v1859, 1.0
    %v1861 = vrcp.pop %v1860
    %v1862 = vmul.f32 1.0, %v1861
    %v1863 = vmul.f32 %v1862, 2.0
    %v1864 = vsub.f32 %v1863, 1.0
    %v1865 = vsel %vm53, %v1864, %v1862
    %v1866 = vmul.f32 %v1865, %v1772
    %1868 = vrot.lane.b32.xlu0 %v1865, 64
    %v1869 = vpop.permute.xlu0 %1868
    %v1871 = vmul.f32 %v1865, %v1869
    %1873 = vrot.lane.b32.xlu0 %v1871, 32
    %v1874 = vpop.permute.xlu0 %1873
    %v1876 = vadd.f32 %v1866, %v1874
    %v1877 = vtanh.pop %v1876
    %1879 = vrot.lane.b32.xlu0 %v1877, 64
    %v1880 = vpop.permute.xlu0 %1879
    %v1882 = vmul.f32 %v1865, %v1880
    %v1883 = vld [vmem:[%s9] sm:$0xff]
    %v1884 = vld [vmem:[%s9 + $0x8] sm:$0xff]
    %v1885 = vld [vmem:[%s9 + $0x10] sm:$0xff]
    %v1886 = vld [vmem:[%s9 + $0x18] sm:$0xff]
    %v1887 = vld [vmem:[%s10] sm:$0x1]
    %v1889 = vlaneseq
    %v1890 = vshrl.u32 %v1889, 7
    %v1891 = vsub.s32 0, %v1890
    %v1892 = vrot.slane %v1887, %v1891
    %1895 = vrot.lane.b32.xlu0 %v1882, 32
    %v1896 = vpop.permute.xlu0 %1895
    %v1897 = vsel %vm229, %v1896, 0
    %1899 = vmatprep.subr.mxu0 0.0
    %1900 = vmatpush1.msra.mxu0 %v1883
    %1901 = vmatprep.subr.mxu0 0.0
    %1902 = vmatpush1.msra.mxu0 %v1884
    %1903 = vmatprep.subr.mxu0 0.0
    %1904 = vmatpush1.msra.mxu0 %v1885
    %1905 = vmatprep.subr.mxu0 0.0
    %1906 = vmatpush1.msra.mxu0 %v1886
    %1907 = vmatprep.subr.mxu0 0.0
    %1908 = vmatpush1.msra.mxu0 0.0
    %1909 = vmatprep.subr.mxu0 0.0
    %1910 = vmatpush1.msra.mxu0 0.0
    %1911 = vmatprep.subr.mxu0 0.0
    %1912 = vmatpush1.msra.mxu0 0.0
    %1913 = vmatprep.subr.mxu0 0.0
    %1914 = vmatpush1.msra.mxu0 0.0
    %1915 = vmatprep.subr.mxu0 0.0
    %1916 = vmatpush1.msra.mxu0 0.0
    %1917 = vmatprep.subr.mxu0 0.0
    %1918 = vmatpush1.msra.mxu0 0.0
    %1919 = vmatprep.subr.mxu0 0.0
    %1920 = vmatpush1.msra.mxu0 0.0
    %1921 = vmatprep.subr.mxu0 0.0
    %1922 = vmatpush1.msra.mxu0 0.0
    %1923 = vmatprep.subr.mxu0 0.0
    %1924 = vmatpush1.msra.mxu0 0.0
    %1925 = vmatprep.subr.mxu0 0.0
    %1926 = vmatpush1.msra.mxu0 0.0
    %1927 = vmatprep.subr.mxu0 0.0
    %1928 = vmatpush1.msra.mxu0 0.0
    %1929 = vmatprep.subr.mxu0 0.0
    %1930 = vmatpush1.msra.mxu0 0.0
    %1931 = vmatprep.subr.mxu0 0.0
    %1932 = vmatpush1.msra.mxu0 0.0
    %1933 = vmatprep.subr.mxu0 0.0
    %1934 = vmatpush1.msra.mxu0 0.0
    %1935 = vmatprep.subr.mxu0 0.0
    %1936 = vmatpush1.msra.mxu0 0.0
    %1937 = vmatprep.subr.mxu0 0.0
    %1938 = vmatpush1.msra.mxu0 0.0
    %1939 = vmatprep.subr.mxu0 0.0
    %1940 = vmatpush1.msra.mxu0 0.0
    %1941 = vmatprep.subr.mxu0 0.0
    %1942 = vmatpush1.msra.mxu0 0.0
    %1943 = vmatprep.subr.mxu0 0.0
    %1944 = vmatpush1.msra.mxu0 0.0
    %1945 = vmatprep.subr.mxu0 0.0
    %1946 = vmatpush1.msra.mxu0 0.0
    %1947 = vmatprep.subr.mxu0 0.0
    %1948 = vmatpush1.msra.mxu0 0.0
    %1949 = vmatprep.subr.mxu0 0.0
    %1950 = vmatpush1.msra.mxu0 0.0
    %1951 = vmatprep.subr.mxu0 0.0
    %1952 = vmatpush1.msra.mxu0 0.0
    %1953 = vmatprep.subr.mxu0 0.0
    %1954 = vmatpush1.msra.mxu0 0.0
    %1955 = vmatprep.subr.mxu0 0.0
    %1956 = vmatpush1.msra.mxu0 0.0
    %1957 = vmatprep.subr.mxu0 0.0
    %1958 = vmatpush1.msra.mxu0 0.0
    %1959 = vmatprep.subr.mxu0 0.0
    %1960 = vmatpush1.msra.mxu0 0.0
    %1961 = vmatprep.subr.mxu0 0.0
    %1962 = vmatpush1.msra.mxu0 0.0
    %1963 = vmatprep.mubr.f32.mxu0 0.0
    %1964 = vmatmul.mubr.f32.gmra.mrb[0].mxu0 %v1154
    %v1965 = vpop.f32.mrb[0].mxu0
    %v1966 = vadd.f32 %v1892, %v1965
    %v1967 = vpop.f32.mrb[0].mxu0
    %1968 = vmatprep.mubr.f32.mxu0 0.0
    %1969 = vmatmul.mubr.f32.gmra.mrb[0].mxu0 %v1262
    %v1970 = vpop.f32.mrb[0].mxu0
    %v1971 = vadd.f32 %v1892, %v1970
    %v1972 = vpop.f32.mrb[0].mxu0
    %1973 = vmatprep.mubr.f32.mxu0 0.0
    %1974 = vmatmul.mubr.f32.gmra.mrb[0].mxu0 %v1366
    %v1975 = vpop.f32.mrb[0].mxu0
    %v1976 = vadd.f32 %v1892, %v1975
    %v1977 = vpop.f32.mrb[0].mxu0
    %1978 = vmatprep.mubr.f32.mxu0 0.0
    %1979 = vmatmul.mubr.f32.gmra.mrb[0].mxu0 %v1470
    %v1980 = vpop.f32.mrb[0].mxu0
    %v1981 = vadd.f32 %v1892, %v1980
    %v1982 = vpop.f32.mrb[0].mxu0
    %1983 = vmatprep.mubr.f32.mxu0 0.0
    %1984 = vmatmul.mubr.f32.gmra.mrb[0].mxu0 %v1574
    %v1985 = vpop.f32.mrb[0].mxu0
    %v1986 = vadd.f32 %v1892, %v1985
    %v1987 = vpop.f32.mrb[0].mxu0
    %1988 = vmatprep.mubr.f32.mxu0 0.0
    %1989 = vmatmul.mubr.f32.gmra.mrb[0].mxu0 %v1678
    %v1990 = vpop.f32.mrb[0].mxu0
    %v1991 = vadd.f32 %v1892, %v1990
    %v1992 = vpop.f32.mrb[0].mxu0
    %1993 = vmatprep.mubr.f32.mxu0 0.0
    %1994 = vmatmul.mubr.f32.gmra.mrb[0].mxu0 %v1782
    %v1995 = vpop.f32.mrb[0].mxu0
    %v1996 = vadd.f32 %v1892, %v1995
    %v1997 = vpop.f32.mrb[0].mxu0
    %1998 = vmatprep.mubr.f32.mxu0 0.0
    %1999 = vmatmul.mubr.f32.gmra.mrb[0].mxu0 %v1897
    %v2000 = vpop.f32.mrb[0].mxu0
    %v2001 = vadd.f32 %v1892, %v2000
    %v2002 = vpop.f32.mrb[0].mxu0
    %2003 = vdwg.mxu0
    %2004 = vst.msk [vmem:[%s11] sm:$0xff] %vm70, %v1966
    %2005 = vst.msk [vmem:[%s11 + $0x8] sm:$0xff] %vm70, %v1971
    %2006 = vst.msk [vmem:[%s11 + $0x10] sm:$0xff] %vm70, %v1976
    %2007 = vst.msk [vmem:[%s11 + $0x18] sm:$0xff] %vm70, %v1981
    %2008 = vst.msk [vmem:[%s11 + $0x20] sm:$0xff] %vm70, %v1986
    %2009 = vst.msk [vmem:[%s11 + $0x28] sm:$0xff] %vm70, %v1991
    %2010 = vst.msk [vmem:[%s11 + $0x30] sm:$0xff] %vm70, %v1996
    %2011 = vst.msk [vmem:[%s11 + $0x38] sm:$0xff] %vm70, %v2001
    // Predicated region
    $region46: #{tpu_custom_call.1} parent=1 // pred_check
      _
    $region47: #{tpu_custom_call.1} parent=1 // pred_check_branch
      %2013 = sbr.rel (0) target = $region49
    $region48: #{tpu_custom_call.1} parent=1 // pred_region
      _
    $region49: #{tpu_custom_call.1} parent=1 // pred_fallthru
      _
    // Predicated region
    $region50: #{tpu_custom_call.1} parent=1 // pred_check
      _
    $region51: #{tpu_custom_call.1} parent=1 // pred_check_branch
      %2015 = sbr.rel (0) target = $region53
    $region52: #{tpu_custom_call.1} parent=1 // pred_region
      %s2017 = ssub.s32 128, 128
      %2018 = vsyncadd [#allocation3], %s2017
      %s2020 = sshll.u32 [#allocation2], 4
      %s2021 = int_to_ptr.vmem [resolvable:$true] %s2020
      %2023 = dma.vmem_to_hbm [thread:$0]  %s2021, 128, %s12, [#allocation3]
    $region53: #{tpu_custom_call.1} parent=1 // pred_fallthru
      _
    // Predicated region
    $region54: #{tpu_custom_call.1} parent=1 // pred_check
      _
    $region55: #{tpu_custom_call.1} parent=1 // pred_check_branch
      %2025 = sbr.rel (0) target = $region57
    $region56: #{tpu_custom_call.1} parent=1 // pred_region
      _
    $region57: #{tpu_custom_call.1} parent=1 // pred_fallthru
      _
    // Predicated region
    $region58: #{tpu_custom_call.1} parent=1 // pred_check
      _
    $region59: #{tpu_custom_call.1} parent=1 // pred_check_branch
      %2027 = sbr.rel (0) target = $region61
    $region60: #{tpu_custom_call.1} parent=1 // pred_region
      %2028 = dma.done [#allocation3], 128
    $region61: #{tpu_custom_call.1} parent=1 // pred_fallthru
      _
    %2029 = vsyncpa [#allocation3], 1

</llo_original>
